<compile_context>
chip_gen: v5e
topology: v5e:2x2
jax: 0.10.0
libtpu: 0.0.40
codegen_flags: <defaults>
</compile_context>

<pallas_src>
import functools

import jax
import jax.numpy as jnp
from jax.experimental import pallas as pl
from jax.experimental.pallas import tpu as pltpu

C_PAD = 128  # lane-padded channel dimension


def _round_up(x, m):
    return (x + m - 1) // m * m


# ----------------------------- Pallas kernel --------------------------------
def jasper_kernel(xw_ref, w_ref, resw_ref, shift_ref, out_ref, *,
                  K, P, T_TILE, H8, T_real):
    """One (batch, time-tile) grid step.

    xw_ref   : (TW, 128)       bf16   haloed input window
    w_ref    : (5, K*128, 128) bf16   fused depthwise*pointwise*BN-scale mats
    resw_ref : (128, 128)      bf16   residual 1x1 conv (BN scale folded in)
    shift_ref: (6, 128)        f32    folded BN shifts (4 blocks, last, residual)
    out_ref  : (T_TILE, 128)   f32
    """
    TW = xw_ref.shape[0]
    shift = shift_ref[...]                              # (6, 128) f32

    h = xw_ref[...].astype(jnp.float32)                 # (TW, 128) f32

    # Residual branch: 1x1 conv (+ folded BN) on the kept (non-halo) region.
    xk = h[H8:H8 + T_TILE, :]                           # aligned static slice
    y = jnp.dot(xk.astype(jnp.bfloat16), resw_ref[...],
                preferred_element_type=jnp.float32)
    y = y + shift[5:6, :]

    # Global time position of each window row, to re-apply each conv's zero
    # padding at the true sequence boundaries between stages.
    pos = (pl.program_id(1) * T_TILE - H8
           + jax.lax.broadcasted_iota(jnp.int32, (TW, 1), 0))
    valid = jnp.logical_and(pos >= 0, pos < T_real)     # (TW, 1)

    # 4 ConvBlocks + "last": (depthwise ∘ pointwise ∘ BN) fused into one matmul
    # per stage; Dropout (eval) = identity.
    for b in range(5):
        slabs = []
        for j in range(K):                              # K shifted slabs
            sh = (P - j) % TW
            hj = h if sh == 0 else pltpu.roll(h, shift=sh, axis=0)
            slabs.append(hj.astype(jnp.bfloat16))
        xb = jnp.concatenate(slabs, axis=1)             # (TW, K*128) bf16
        acc = jnp.dot(xb, w_ref[b], preferred_element_type=jnp.float32)
        acc = acc + shift[b:b + 1, :]
        if b < 4:
            acc = jnp.maximum(acc, 0.0)                 # ReLU
            h = jnp.where(valid, acc, 0.0)              # zero "conv padding"
        else:
            out = jnp.maximum(acc[H8:H8 + T_TILE, :] + y, 0.0)
            out_ref[...] = out.astype(out_ref.dtype)


# ------------------------------ glue / wrapper -------------------------------
def _fold_bn(bn):
    eps = 1e-3
    s = bn["gamma"] / jnp.sqrt(bn["var"] + eps)
    return s, bn["beta"] - bn["mean"] * s


def jasper_block_1d(x_nct, params, kernel_size, padding):
    N, Cin, T = x_nct.shape
    Cout = params["res_w"].shape[0]
    K, P = kernel_size, padding

    # Tiling: time tile sized for VMEM (multiple of 8 sublanes), halo of
    # 5 * per-stage reach per side, rounded to 8.
    T_TILE = min(512, _round_up(T, 8))
    T_pad = _round_up(T, T_TILE)
    NT = T_pad // T_TILE
    reach = max(P, K - 1 - P)
    H8 = _round_up(5 * reach, 8)
    TW = T_TILE + 2 * H8

    # ---- pack fused weights: W_big[j] = dw_tap_j ⊗ (pw * bn_scale) ----------
    W_all = jnp.zeros((5, K * C_PAD, C_PAD), jnp.float32)
    shift_all = jnp.zeros((6, C_PAD), jnp.float32)
    stages = params["blocks"] + [params["last"]]
    for i, st in enumerate(stages):
        dw = st["dw"][:, 0, :]                              # (ci, K)
        pwm = jnp.transpose(st["pw"][:, :, 0], (1, 0))      # (ci, co)
        s, b = _fold_bn(st["bn"])
        pws = pwm * s[None, :]                              # fold BN scale
        ci, co = pwm.shape
        for j in range(K):
            W_all = W_all.at[i, j * C_PAD:j * C_PAD + ci, :co].set(
                dw[:, j][:, None] * pws)
        shift_all = shift_all.at[i, :co].set(b)

    s, b = _fold_bn(params["res_bn"])
    resw = jnp.zeros((C_PAD, C_PAD), jnp.float32)
    resw = resw.at[:Cin, :Cout].set(
        jnp.transpose(params["res_w"][:, :, 0], (1, 0)) * s[None, :])
    shift_all = shift_all.at[5, :Cout].set(b)

    W_all = W_all.astype(jnp.bfloat16)
    resw = resw.astype(jnp.bfloat16)

    # ---- haloed, lane-padded input windows: (N, NT, TW, 128) bf16 -----------
    xp = jnp.zeros((N, T_pad + 2 * H8, C_PAD), jnp.float32)
    xp = xp.at[:, H8:H8 + T, :Cin].set(
        jnp.transpose(x_nct, (0, 2, 1)).astype(jnp.float32))
    win_idx = jnp.arange(NT)[:, None] * T_TILE + jnp.arange(TW)[None, :]
    xw_all = xp[:, win_idx, :].astype(jnp.bfloat16)         # (N, NT, TW, 128)

    kernel = functools.partial(jasper_kernel, K=K, P=P, T_TILE=T_TILE,
                               H8=H8, T_real=T)
    out = pl.pallas_call(
        kernel,
        out_shape=jax.ShapeDtypeStruct((N, T_pad, C_PAD), jnp.float32),
        grid=(N, NT),
        in_specs=[
            pl.BlockSpec((None, None, TW, C_PAD), lambda n, t: (n, t, 0, 0)),
            pl.BlockSpec((5, K * C_PAD, C_PAD), lambda n, t: (0, 0, 0)),
            pl.BlockSpec((C_PAD, C_PAD), lambda n, t: (0, 0)),
            pl.BlockSpec((6, C_PAD), lambda n, t: (0, 0)),
        ],
        out_specs=pl.BlockSpec((None, T_TILE, C_PAD), lambda n, t: (n, t, 0)),
        compiler_params=pltpu.CompilerParams(
            dimension_semantics=("parallel", "parallel"),
            vmem_limit_bytes=32 * 1024 * 1024),
    )(xw_all, W_all, resw, shift_all)

    # (N, T_pad, C_PAD) -> NCT
    return jnp.transpose(out[:, :T, :Cout], (0, 2, 1))


# ------------------------- deterministic parameters --------------------------
def _make_bn(key, c):
    k1, k2, k3, k4 = jax.random.split(key, 4)
    return dict(
        gamma=1.0 + 0.1 * jax.random.normal(k1, (c,), jnp.float32),
        beta=0.1 * jax.random.normal(k2, (c,), jnp.float32),
        mean=0.1 * jax.random.normal(k3, (c,), jnp.float32),
        var=jax.random.uniform(k4, (c,), jnp.float32, 0.5, 1.5),
    )


def make_params(key, in_ch, out_ch, k):
    keys = jax.random.split(key, 32)
    ki = iter(keys)
    blocks = []
    cin = in_ch
    for _ in range(4):
        blocks.append(dict(
            dw=0.3 * jax.random.normal(next(ki), (cin, 1, k), jnp.float32),
            pw=(1.0 / jnp.sqrt(cin)) *
               jax.random.normal(next(ki), (out_ch, cin, 1), jnp.float32),
            bn=_make_bn(next(ki), out_ch),
        ))
        cin = out_ch
    last = dict(
        dw=0.3 * jax.random.normal(next(ki), (out_ch, 1, k), jnp.float32),
        pw=(1.0 / jnp.sqrt(out_ch)) *
           jax.random.normal(next(ki), (out_ch, out_ch, 1), jnp.float32),
        bn=_make_bn(next(ki), out_ch),
    )
    res_w = (1.0 / jnp.sqrt(in_ch)) * jax.random.normal(
        next(ki), (out_ch, in_ch, 1), jnp.float32)
    res_bn = _make_bn(next(ki), out_ch)
    return dict(blocks=blocks, last=last, res_w=res_w, res_bn=res_bn)


# ----------------------------- pure-JAX reference ----------------------------
def _ref_depthwise(x, w, P):  # x (N,C,T), w (C,1,K)
    T, K = x.shape[2], w.shape[2]
    xp = jnp.pad(x, ((0, 0), (0, 0), (P, P)))
    out = jnp.zeros_like(x)
    for j in range(K):
        out = out + xp[:, :, j:j + T] * w[:, 0, j][None, :, None]
    return out


def _ref_pointwise(x, w):  # w (O,I,1)
    return jnp.einsum("nit,oi->not", x, w[:, :, 0],
                      precision=jax.lax.Precision.HIGHEST)


def _ref_bn(x, bn):
    eps = 1e-3
    s = bn["gamma"] / jnp.sqrt(bn["var"] + eps)
    b = bn["beta"] - bn["mean"] * s
    return x * s[None, :, None] + b[None, :, None]


def jasper_reference(x, params, P):
    y = _ref_bn(_ref_pointwise(x, params["res_w"]), params["res_bn"])
    h = x
    for blk in params["blocks"]:
        h = _ref_depthwise(h, blk["dw"], P)
        h = _ref_pointwise(h, blk["pw"])
        h = jnp.maximum(_ref_bn(h, blk["bn"]), 0.0)
    last = params["last"]
    h = _ref_depthwise(h, last["dw"], P)
    h = _ref_pointwise(h, last["pw"])
    h = _ref_bn(h, last["bn"])
    return jnp.maximum(h + y, 0.0)


# ------------------------------------ main -----------------------------------
if __name__ == "__main__":
    N, IN_CH, OUT_CH, T = 2, 4, 8, 16
    K, P = 3, 1

    key = jax.random.PRNGKey(0)
    kx, kp = jax.random.split(key)
    x = jax.random.normal(kx, (N, IN_CH, T), jnp.float32)
    params = make_params(kp, IN_CH, OUT_CH, K)

    out = jasper_block_1d(x, params, kernel_size=K, padding=P)
    out = jax.block_until_ready(out)

    ref = jasper_reference(x, params, P)
    assert out.shape == (N, OUT_CH, T), out.shape
    # bf16 matmuls (f32 accumulation) vs f32/HIGHEST reference -> looser tol.
    assert jnp.allclose(out, ref, rtol=3e-2, atol=3e-2), \
        float(jnp.max(jnp.abs(out - ref)))

    print("KERNEL_OK")
</pallas_src>

<mosaic_0001>
module attributes {stable_mosaic.version = 11 : i64} {
  func.func @jasper_kernel(%arg0: i32, %arg1: i32, %arg2: memref<1x1x32x128xbf16, #tpu.memory_space<vmem>>, %arg3: memref<5x384x128xbf16, #tpu.memory_space<vmem>>, %arg4: memref<128x128xbf16, #tpu.memory_space<vmem>>, %arg5: memref<6x128xf32, #tpu.memory_space<vmem>>, %arg6: memref<1x16x128xf32, #tpu.memory_space<vmem>>) attributes {dimension_semantics = [#tpu.dimension_semantics<parallel>, #tpu.dimension_semantics<parallel>], iteration_bounds = array<i64: 2, 1>, scalar_prefetch = 0 : i64, scratch_operands = 0 : i64, tpu.core_type = #tpu.core_type<tc>, window_params = [{transform_indices = @transform_0, window_bounds = array<i64: 1, 1, 32, 128>}, {pipeline_mode = #tpu.pipeline_mode<synchronous>, transform_indices = @transform_1, window_bounds = array<i64: 5, 384, 128>}, {pipeline_mode = #tpu.pipeline_mode<synchronous>, transform_indices = @transform_2, window_bounds = array<i64: 128, 128>}, {pipeline_mode = #tpu.pipeline_mode<synchronous>, transform_indices = @transform_3, window_bounds = array<i64: 6, 128>}, {transform_indices = @transform_4, window_bounds = array<i64: 1, 16, 128>}]} {
    %c0 = arith.constant 0 : index
    %c0_0 = arith.constant 0 : index
    %0 = vector.load %arg5[%c0, %c0_0] : memref<6x128xf32, #tpu.memory_space<vmem>>, vector<6x128xf32>
    %c0_1 = arith.constant 0 : index
    %c0_2 = arith.constant 0 : index
    %c0_3 = arith.constant 0 : index
    %c0_4 = arith.constant 0 : index
    %1 = vector.load %arg2[%c0_1, %c0_2, %c0_3, %c0_4] : memref<1x1x32x128xbf16, #tpu.memory_space<vmem>>, vector<1x1x32x128xbf16>
    %2 = vector.shape_cast %1 : vector<1x1x32x128xbf16> to vector<32x128xbf16>
    %3 = arith.extf %2 : vector<32x128xbf16> to vector<32x128xf32>
    %4 = vector.extract_strided_slice %3 {offsets = [8, 0], sizes = [16, 128], strides = [1, 1]} : vector<32x128xf32> to vector<16x128xf32>
    %5 = arith.truncf %4 : vector<16x128xf32> to vector<16x128xbf16>
    %c0_5 = arith.constant 0 : index
    %c0_6 = arith.constant 0 : index
    %6 = vector.load %arg4[%c0_5, %c0_6] : memref<128x128xbf16, #tpu.memory_space<vmem>>, vector<128x128xbf16>
    %cst = arith.constant dense<0.000000e+00> : vector<16x128xf32>
    %7 = tpu.matmul %5, %6, %cst {dimension_numbers = #tpu.dot_dimension_numbers<[1], [0], [0], [1], [0, 0, 1, 1], [], []>} : vector<16x128xbf16>, vector<128x128xbf16>, vector<16x128xf32> -> vector<16x128xf32>
    %8 = vector.extract_strided_slice %0 {offsets = [5, 0], sizes = [1, 128], strides = [1, 1]} : vector<6x128xf32> to vector<1x128xf32>
    %9 = vector.broadcast %8 : vector<1x128xf32> to vector<16x128xf32>
    %10 = arith.addf %7, %9 : vector<16x128xf32>
    %c16_i32 = arith.constant 16 : i32
    %11 = arith.muli %arg1, %c16_i32 : i32
    %c8_i32 = arith.constant 8 : i32
    %12 = arith.subi %11, %c8_i32 : i32
    %13 = tpu.iota {dimensions = array<i32: 0>} : vector<32x1xi32>
    %14 = vector.broadcast %12 : i32 to vector<32x1xi32>
    %15 = arith.addi %14, %13 : vector<32x1xi32>
    %c0_i32 = arith.constant 0 : i32
    %16 = vector.broadcast %c0_i32 : i32 to vector<32x1xi32>
    %17 = arith.cmpi sge, %15, %16 : vector<32x1xi32>
    %c16_i32_7 = arith.constant 16 : i32
    %18 = vector.broadcast %c16_i32_7 : i32 to vector<32x1xi32>
    %19 = arith.cmpi slt, %15, %18 : vector<32x1xi32>
    %20 = arith.andi %17, %19 : vector<32x1xi1>
    %c1_i32 = arith.constant 1 : i32
    %21 = tpu.dynamic_rotate %3 by %c1_i32 dim 0 : vector<32x128xf32>, i32 -> vector<32x128xf32>
    %22 = arith.truncf %21 : vector<32x128xf32> to vector<32x128xbf16>
    %23 = arith.truncf %3 : vector<32x128xf32> to vector<32x128xbf16>
    %c31_i32 = arith.constant 31 : i32
    %24 = tpu.dynamic_rotate %3 by %c31_i32 dim 0 : vector<32x128xf32>, i32 -> vector<32x128xf32>
    %25 = arith.truncf %24 : vector<32x128xf32> to vector<32x128xbf16>
    %26 = tpu.concatenate %22, %23, %25 in 1 : vector<32x128xbf16>, vector<32x128xbf16>, vector<32x128xbf16> -> vector<32x384xbf16>
    %c0_8 = arith.constant 0 : index
    %c0_9 = arith.constant 0 : index
    %c0_10 = arith.constant 0 : index
    %27 = vector.load %arg3[%c0_8, %c0_9, %c0_10] : memref<5x384x128xbf16, #tpu.memory_space<vmem>>, vector<1x384x128xbf16>
    %28 = vector.shape_cast %27 : vector<1x384x128xbf16> to vector<384x128xbf16>
    %cst_11 = arith.constant dense<0.000000e+00> : vector<32x128xf32>
    %29 = tpu.matmul %26, %28, %cst_11 {dimension_numbers = #tpu.dot_dimension_numbers<[1], [0], [0], [1], [0, 0, 1, 1], [], []>} : vector<32x384xbf16>, vector<384x128xbf16>, vector<32x128xf32> -> vector<32x128xf32>
    %30 = vector.extract_strided_slice %0 {offsets = [0, 0], sizes = [1, 128], strides = [1, 1]} : vector<6x128xf32> to vector<1x128xf32>
    %31 = vector.broadcast %30 : vector<1x128xf32> to vector<32x128xf32>
    %32 = arith.addf %29, %31 : vector<32x128xf32>
    %cst_12 = arith.constant 0.000000e+00 : f32
    %33 = vector.broadcast %cst_12 : f32 to vector<32x128xf32>
    %34 = arith.maximumf %32, %33 : vector<32x128xf32>
    %cst_13 = arith.constant 0.000000e+00 : f32
    %35 = vector.shape_cast %20 : vector<32x1xi1> to vector<32x1xi1>
    %36 = vector.broadcast %35 : vector<32x1xi1> to vector<32x128xi1>
    %37 = vector.broadcast %cst_13 : f32 to vector<32x128xf32>
    %38 = arith.select %36, %34, %37 : vector<32x128xi1>, vector<32x128xf32>
    %c1_i32_14 = arith.constant 1 : i32
    %39 = tpu.dynamic_rotate %38 by %c1_i32_14 dim 0 : vector<32x128xf32>, i32 -> vector<32x128xf32>
    %40 = arith.truncf %39 : vector<32x128xf32> to vector<32x128xbf16>
    %41 = arith.truncf %38 : vector<32x128xf32> to vector<32x128xbf16>
    %c31_i32_15 = arith.constant 31 : i32
    %42 = tpu.dynamic_rotate %38 by %c31_i32_15 dim 0 : vector<32x128xf32>, i32 -> vector<32x128xf32>
    %43 = arith.truncf %42 : vector<32x128xf32> to vector<32x128xbf16>
    %44 = tpu.concatenate %40, %41, %43 in 1 : vector<32x128xbf16>, vector<32x128xbf16>, vector<32x128xbf16> -> vector<32x384xbf16>
    %c1 = arith.constant 1 : index
    %c0_16 = arith.constant 0 : index
    %c0_17 = arith.constant 0 : index
    %45 = vector.load %arg3[%c1, %c0_16, %c0_17] : memref<5x384x128xbf16, #tpu.memory_space<vmem>>, vector<1x384x128xbf16>
    %46 = vector.shape_cast %45 : vector<1x384x128xbf16> to vector<384x128xbf16>
    %cst_18 = arith.constant dense<0.000000e+00> : vector<32x128xf32>
    %47 = tpu.matmul %44, %46, %cst_18 {dimension_numbers = #tpu.dot_dimension_numbers<[1], [0], [0], [1], [0, 0, 1, 1], [], []>} : vector<32x384xbf16>, vector<384x128xbf16>, vector<32x128xf32> -> vector<32x128xf32>
    %48 = vector.extract_strided_slice %0 {offsets = [1, 0], sizes = [1, 128], strides = [1, 1]} : vector<6x128xf32> to vector<1x128xf32>
    %49 = vector.broadcast %48 : vector<1x128xf32> to vector<32x128xf32>
    %50 = arith.addf %47, %49 : vector<32x128xf32>
    %cst_19 = arith.constant 0.000000e+00 : f32
    %51 = vector.broadcast %cst_19 : f32 to vector<32x128xf32>
    %52 = arith.maximumf %50, %51 : vector<32x128xf32>
    %cst_20 = arith.constant 0.000000e+00 : f32
    %53 = vector.shape_cast %20 : vector<32x1xi1> to vector<32x1xi1>
    %54 = vector.broadcast %53 : vector<32x1xi1> to vector<32x128xi1>
    %55 = vector.broadcast %cst_20 : f32 to vector<32x128xf32>
    %56 = arith.select %54, %52, %55 : vector<32x128xi1>, vector<32x128xf32>
    %c1_i32_21 = arith.constant 1 : i32
    %57 = tpu.dynamic_rotate %56 by %c1_i32_21 dim 0 : vector<32x128xf32>, i32 -> vector<32x128xf32>
    %58 = arith.truncf %57 : vector<32x128xf32> to vector<32x128xbf16>
    %59 = arith.truncf %56 : vector<32x128xf32> to vector<32x128xbf16>
    %c31_i32_22 = arith.constant 31 : i32
    %60 = tpu.dynamic_rotate %56 by %c31_i32_22 dim 0 : vector<32x128xf32>, i32 -> vector<32x128xf32>
    %61 = arith.truncf %60 : vector<32x128xf32> to vector<32x128xbf16>
    %62 = tpu.concatenate %58, %59, %61 in 1 : vector<32x128xbf16>, vector<32x128xbf16>, vector<32x128xbf16> -> vector<32x384xbf16>
    %c2 = arith.constant 2 : index
    %c0_23 = arith.constant 0 : index
    %c0_24 = arith.constant 0 : index
    %63 = vector.load %arg3[%c2, %c0_23, %c0_24] : memref<5x384x128xbf16, #tpu.memory_space<vmem>>, vector<1x384x128xbf16>
    %64 = vector.shape_cast %63 : vector<1x384x128xbf16> to vector<384x128xbf16>
    %cst_25 = arith.constant dense<0.000000e+00> : vector<32x128xf32>
    %65 = tpu.matmul %62, %64, %cst_25 {dimension_numbers = #tpu.dot_dimension_numbers<[1], [0], [0], [1], [0, 0, 1, 1], [], []>} : vector<32x384xbf16>, vector<384x128xbf16>, vector<32x128xf32> -> vector<32x128xf32>
    %66 = vector.extract_strided_slice %0 {offsets = [2, 0], sizes = [1, 128], strides = [1, 1]} : vector<6x128xf32> to vector<1x128xf32>
    %67 = vector.broadcast %66 : vector<1x128xf32> to vector<32x128xf32>
    %68 = arith.addf %65, %67 : vector<32x128xf32>
    %cst_26 = arith.constant 0.000000e+00 : f32
    %69 = vector.broadcast %cst_26 : f32 to vector<32x128xf32>
    %70 = arith.maximumf %68, %69 : vector<32x128xf32>
    %cst_27 = arith.constant 0.000000e+00 : f32
    %71 = vector.shape_cast %20 : vector<32x1xi1> to vector<32x1xi1>
    %72 = vector.broadcast %71 : vector<32x1xi1> to vector<32x128xi1>
    %73 = vector.broadcast %cst_27 : f32 to vector<32x128xf32>
    %74 = arith.select %72, %70, %73 : vector<32x128xi1>, vector<32x128xf32>
    %c1_i32_28 = arith.constant 1 : i32
    %75 = tpu.dynamic_rotate %74 by %c1_i32_28 dim 0 : vector<32x128xf32>, i32 -> vector<32x128xf32>
    %76 = arith.truncf %75 : vector<32x128xf32> to vector<32x128xbf16>
    %77 = arith.truncf %74 : vector<32x128xf32> to vector<32x128xbf16>
    %c31_i32_29 = arith.constant 31 : i32
    %78 = tpu.dynamic_rotate %74 by %c31_i32_29 dim 0 : vector<32x128xf32>, i32 -> vector<32x128xf32>
    %79 = arith.truncf %78 : vector<32x128xf32> to vector<32x128xbf16>
    %80 = tpu.concatenate %76, %77, %79 in 1 : vector<32x128xbf16>, vector<32x128xbf16>, vector<32x128xbf16> -> vector<32x384xbf16>
    %c3 = arith.constant 3 : index
    %c0_30 = arith.constant 0 : index
    %c0_31 = arith.constant 0 : index
    %81 = vector.load %arg3[%c3, %c0_30, %c0_31] : memref<5x384x128xbf16, #tpu.memory_space<vmem>>, vector<1x384x128xbf16>
    %82 = vector.shape_cast %81 : vector<1x384x128xbf16> to vector<384x128xbf16>
    %cst_32 = arith.constant dense<0.000000e+00> : vector<32x128xf32>
    %83 = tpu.matmul %80, %82, %cst_32 {dimension_numbers = #tpu.dot_dimension_numbers<[1], [0], [0], [1], [0, 0, 1, 1], [], []>} : vector<32x384xbf16>, vector<384x128xbf16>, vector<32x128xf32> -> vector<32x128xf32>
    %84 = vector.extract_strided_slice %0 {offsets = [3, 0], sizes = [1, 128], strides = [1, 1]} : vector<6x128xf32> to vector<1x128xf32>
    %85 = vector.broadcast %84 : vector<1x128xf32> to vector<32x128xf32>
    %86 = arith.addf %83, %85 : vector<32x128xf32>
    %cst_33 = arith.constant 0.000000e+00 : f32
    %87 = vector.broadcast %cst_33 : f32 to vector<32x128xf32>
    %88 = arith.maximumf %86, %87 : vector<32x128xf32>
    %cst_34 = arith.constant 0.000000e+00 : f32
    %89 = vector.shape_cast %20 : vector<32x1xi1> to vector<32x1xi1>
    %90 = vector.broadcast %89 : vector<32x1xi1> to vector<32x128xi1>
    %91 = vector.broadcast %cst_34 : f32 to vector<32x128xf32>
    %92 = arith.select %90, %88, %91 : vector<32x128xi1>, vector<32x128xf32>
    %c1_i32_35 = arith.constant 1 : i32
    %93 = tpu.dynamic_rotate %92 by %c1_i32_35 dim 0 : vector<32x128xf32>, i32 -> vector<32x128xf32>
    %94 = arith.truncf %93 : vector<32x128xf32> to vector<32x128xbf16>
    %95 = arith.truncf %92 : vector<32x128xf32> to vector<32x128xbf16>
    %c31_i32_36 = arith.constant 31 : i32
    %96 = tpu.dynamic_rotate %92 by %c31_i32_36 dim 0 : vector<32x128xf32>, i32 -> vector<32x128xf32>
    %97 = arith.truncf %96 : vector<32x128xf32> to vector<32x128xbf16>
    %98 = tpu.concatenate %94, %95, %97 in 1 : vector<32x128xbf16>, vector<32x128xbf16>, vector<32x128xbf16> -> vector<32x384xbf16>
    %c4 = arith.constant 4 : index
    %c0_37 = arith.constant 0 : index
    %c0_38 = arith.constant 0 : index
    %99 = vector.load %arg3[%c4, %c0_37, %c0_38] : memref<5x384x128xbf16, #tpu.memory_space<vmem>>, vector<1x384x128xbf16>
    %100 = vector.shape_cast %99 : vector<1x384x128xbf16> to vector<384x128xbf16>
    %cst_39 = arith.constant dense<0.000000e+00> : vector<32x128xf32>
    %101 = tpu.matmul %98, %100, %cst_39 {dimension_numbers = #tpu.dot_dimension_numbers<[1], [0], [0], [1], [0, 0, 1, 1], [], []>} : vector<32x384xbf16>, vector<384x128xbf16>, vector<32x128xf32> -> vector<32x128xf32>
    %102 = vector.extract_strided_slice %0 {offsets = [4, 0], sizes = [1, 128], strides = [1, 1]} : vector<6x128xf32> to vector<1x128xf32>
    %103 = vector.broadcast %102 : vector<1x128xf32> to vector<32x128xf32>
    %104 = arith.addf %101, %103 : vector<32x128xf32>
    %105 = vector.extract_strided_slice %104 {offsets = [8, 0], sizes = [16, 128], strides = [1, 1]} : vector<32x128xf32> to vector<16x128xf32>
    %106 = arith.addf %105, %10 : vector<16x128xf32>
    %cst_40 = arith.constant 0.000000e+00 : f32
    %107 = vector.broadcast %cst_40 : f32 to vector<16x128xf32>
    %108 = arith.maximumf %106, %107 : vector<16x128xf32>
    %c0_41 = arith.constant 0 : index
    %c0_42 = arith.constant 0 : index
    %c0_43 = arith.constant 0 : index
    %109 = vector.load %arg6[%c0_41, %c0_42, %c0_43] : memref<1x16x128xf32, #tpu.memory_space<vmem>>, vector<1x16x128xf32>
    %110 = vector.shape_cast %109 : vector<1x16x128xf32> to vector<16x128xf32>
    %111 = vector.shape_cast %108 : vector<16x128xf32> to vector<1x16x128xf32>
    tpu.vector_store %arg6[%c0_41, %c0_42, %c0_43], %111 {strides = array<i32>} : memref<1x16x128xf32, #tpu.memory_space<vmem>>, vector<1x16x128xf32>,
    return
  }
  func.func @transform_0(%arg0: i32, %arg1: i32) -> (i32, i32, i32, i32) {
    %c0_i32 = arith.constant 0 : i32
    %c0_i32_0 = arith.constant 0 : i32
    %c0_i32_1 = arith.constant 0 : i32
    return %arg0, %arg1, %c0_i32, %c0_i32_0 : i32, i32, i32, i32
  }
  func.func @transform_1(%arg0: i32, %arg1: i32) -> (i32, i32, i32) {
    %c0_i32 = arith.constant 0 : i32
    %c0_i32_0 = arith.constant 0 : i32
    %c0_i32_1 = arith.constant 0 : i32
    %c0_i32_2 = arith.constant 0 : i32
    return %c0_i32, %c0_i32_0, %c0_i32_1 : i32, i32, i32
  }
  func.func @transform_2(%arg0: i32, %arg1: i32) -> (i32, i32) {
    %c0_i32 = arith.constant 0 : i32
    %c0_i32_0 = arith.constant 0 : i32
    %c0_i32_1 = arith.constant 0 : i32
    return %c0_i32, %c0_i32_0 : i32, i32
  }
  func.func @transform_3(%arg0: i32, %arg1: i32) -> (i32, i32) {
    %c0_i32 = arith.constant 0 : i32
    %c0_i32_0 = arith.constant 0 : i32
    %c0_i32_1 = arith.constant 0 : i32
    return %c0_i32, %c0_i32_0 : i32, i32
  }
  func.func @transform_4(%arg0: i32, %arg1: i32) -> (i32, i32, i32) {
    %c0_i32 = arith.constant 0 : i32
    %c0_i32_0 = arith.constant 0 : i32
    return %arg0, %arg1, %c0_i32 : i32, i32, i32
  }
}

</mosaic_0001>

<llo_original>
// kernel: tpu_custom_call.1
$region0: #{tpu_custom_call.1}
  #allocation0 [shape = 'u32[]', space=smem, size = 0x4, offset = 0x4, fixed_abs, tag = 'smem constant byte address 0x4 - core index']
  #allocation1 [shape = 'u32[72,128]{1,0:T(1,128)}', space=vmem, size = 0x9000, scoped, tag = 'internal scratch']
  %s0 = inlined_call_operand.hbm [shape: bf16[2,1,32,128], index: 0, kind: input, shape index: {}]
  %s1 = inlined_call_operand.hbm [shape: bf16[5,384,128], index: 1, kind: input, shape index: {}]
  %s2 = inlined_call_operand.hbm [shape: bf16[128,128], index: 2, kind: input, shape index: {}]
  %s3 = inlined_call_operand.hbm [shape: f32[6,128], index: 3, kind: input, shape index: {}]
  %s4 = inlined_call_operand.hbm [shape: f32[2,16,128], index: 4, kind: output, shape index: {}]
  %s5 = sld [smem:[#allocation0]]
  $region65: #{tpu_custom_call.1} parent=0
    _
  %s7 = ssub.s32 1, %s5
  %s8 = scalar_select 0, %s7, %s5
  $region1: #{tpu_custom_call.1} parent=0
    #allocation2 [shape = 'u8[16384]{0}', space=vmem, size = 0x4000, scoped, tag = 'input window, operand 0']
    #allocation3 [shape = 's32[2]{0}', space=sflag, size = 0x8, scoped, tag = 'scoped memory for tpu_custom_call.1']
    #allocation4 [shape = 's32[2]{0}', space=sflag, size = 0x8, scoped, tag = 'scoped memory for tpu_custom_call.1']
    #allocation5 [shape = 'u8[491520]{0}', space=vmem, size = 0x78000, scoped, tag = 'input window, operand 1, single buffered']
    #allocation6 [shape = 's32[1]{0}', space=sflag, size = 0x4, scoped, tag = 'scoped memory for tpu_custom_call.1']
    #allocation7 [shape = 'u8[32768]{0}', space=vmem, size = 0x8000, scoped, tag = 'input window, operand 2, single buffered']
    #allocation8 [shape = 'u8[4096]{0}', space=vmem, size = 0x1000, scoped, tag = 'input window, operand 3, single buffered']
    #allocation9 [shape = 's32[1]{0}', space=sflag, size = 0x4, scoped, tag = 'scoped memory for tpu_custom_call.1']
    #allocation10 [shape = 'u8[16384]{0}', space=vmem, size = 0x4000, scoped, tag = 'output window, operand 0']
    %9 = vsyncpa [#allocation3], 0
    %s10 = scalar_lea.sflag [#allocation3], 1
    %11 = vsyncpa %s10, 0
    %12 = vsyncpa [#allocation6], 0
    %13 = vsyncpa [#allocation9], 0
    %14 = vsyncpa [#allocation4], 0
    %s15 = scalar_lea.sflag [#allocation4], 1
    %16 = vsyncpa %s15, 0
    loop: start=0, step=1, limit=4
    $region2: #{tpu_custom_call.1} parent=1 // loop_pre_header
      _
    $region3: #{tpu_custom_call.1} parent=1 // loop_header
      %s18 = sphi 0, %s22
      %p19 = scmp.ge.s32.totalorder %s18, 4
      %s25 = sphi 0, %s37
      %s26 = sphi 0, %s33
      %s27 = sphi 0, %s25
      %s28 = sphi 0, %s26
      %s29 = sphi 0, %s27
      %s30 = sphi 0, %s28
      %s42 = sphi 0, %s44
      %s45 = sphi 0, %s42
      %s46 = sphi 0, %s45
      %s62 = sphi 0, %s46
      %s66 = sphi 0, %s66
      %s68 = sphi 0, %s66
      %s69 = sphi 0, %s68
      %s83 = sphi 0, %s69
      %s87 = sphi 0, %s87
      %s89 = sphi 0, %s87
      %s90 = sphi 0, %s89
      %s104 = sphi 0, %s90
      %s108 = sphi 0, %s108
      %s110 = sphi 0, %s108
      %s111 = sphi 0, %s110
      %s125 = sphi 0, %s111
      %s133 = sphi 0, %s135
      %s136 = sphi 0, %s133
      %s137 = sphi 0, %s136
      %s153 = sphi 0, %s137
    $region4: #{tpu_custom_call.1} parent=1 // loop_header_branch
      %21 = sbr.rel (%p19) target = $region8
    $region5: #{tpu_custom_call.1} parent=1 // loop_body
      %s23 = ssub.s32 %s18, 1
      %s24 = ssub.s32 %s18, 2
      %s31 = sadd.s32 1, %s26
      %p32 = scmp.ge.s32.totalorder %s31, 1
      %s33 = scalar_select %p32, 0, %s31
      %s34 = sadd.s32 1, %s25
      %s35 = scalar_select %p32, %s34, %s25
      %p36 = scmp.ge.s32.totalorder %s35, 2
      %s37 = scalar_select %p36, 0, %s35
      %s38 = ssub.s32 %s25, %s37
      %s39 = ssub.s32 %s26, %s33
      %s40 = sor.u32 %s38, %s39
      %p41 = scmp.eq.s32.totalorder %s40, 0
      %s43 = sadd.s32 %s42, 1
      %s44 = scalar_select %p41, %s42, %s43
      %p47 = pneg %p41
      %p48 = scmp.eq.s32.totalorder %s18, 1
      %p49 = por %p47, %p48
      %p50 = scmp.ne.s32.totalorder %s42, %s45
      %p51 = scmp.eq.s32.totalorder %s18, 0
      %p52 = por %p50, %p51
      %p53 = scmp.ne.s32.totalorder %s42, %s45
      %p54 = scmp.eq.s32.totalorder %s23, 1
      %p55 = por %p53, %p54
      %p56 = scmp.ne.s32.totalorder %s45, %s46
      %p57 = scmp.eq.s32.totalorder %s23, 0
      %p58 = por %p56, %p57
      %p59 = scmp.ne.s32.totalorder %s45, %s46
      %p60 = scmp.eq.s32.totalorder %s24, 1
      %p61 = por %p59, %p60
      %p63 = scmp.ne.s32.totalorder %s46, %s62
      %p64 = scmp.eq.s32.totalorder %s24, 0
      %p65 = por %p63, %p64
      %s67 = sadd.s32 %s66, 1
      %p70 = scmp.eq.s32.totalorder %s18, 1
      %p71 = scmp.ne.s32.totalorder %s66, %s68
      %p72 = scmp.eq.s32.totalorder %s18, 0
      %p73 = por %p71, %p72
      %p74 = scmp.ne.s32.totalorder %s66, %s68
      %p75 = scmp.eq.s32.totalorder %s23, 1
      %p76 = por %p74, %p75
      %p77 = scmp.ne.s32.totalorder %s68, %s69
      %p78 = scmp.eq.s32.totalorder %s23, 0
      %p79 = por %p77, %p78
      %p80 = scmp.ne.s32.totalorder %s68, %s69
      %p81 = scmp.eq.s32.totalorder %s24, 1
      %p82 = por %p80, %p81
      %p84 = scmp.ne.s32.totalorder %s69, %s83
      %p85 = scmp.eq.s32.totalorder %s24, 0
      %p86 = por %p84, %p85
      %s88 = sadd.s32 %s87, 1
      %p91 = scmp.eq.s32.totalorder %s18, 1
      %p92 = scmp.ne.s32.totalorder %s87, %s89
      %p93 = scmp.eq.s32.totalorder %s18, 0
      %p94 = por %p92, %p93
      %p95 = scmp.ne.s32.totalorder %s87, %s89
      %p96 = scmp.eq.s32.totalorder %s23, 1
      %p97 = por %p95, %p96
      %p98 = scmp.ne.s32.totalorder %s89, %s90
      %p99 = scmp.eq.s32.totalorder %s23, 0
      %p100 = por %p98, %p99
      %p101 = scmp.ne.s32.totalorder %s89, %s90
      %p102 = scmp.eq.s32.totalorder %s24, 1
      %p103 = por %p101, %p102
      %p105 = scmp.ne.s32.totalorder %s90, %s104
      %p106 = scmp.eq.s32.totalorder %s24, 0
      %p107 = por %p105, %p106
      %s109 = sadd.s32 %s108, 1
      %p112 = scmp.eq.s32.totalorder %s18, 1
      %p113 = scmp.ne.s32.totalorder %s108, %s110
      %p114 = scmp.eq.s32.totalorder %s18, 0
      %p115 = por %p113, %p114
      %p116 = scmp.ne.s32.totalorder %s108, %s110
      %p117 = scmp.eq.s32.totalorder %s23, 1
      %p118 = por %p116, %p117
      %p119 = scmp.ne.s32.totalorder %s110, %s111
      %p120 = scmp.eq.s32.totalorder %s23, 0
      %p121 = por %p119, %p120
      %p122 = scmp.ne.s32.totalorder %s110, %s111
      %p123 = scmp.eq.s32.totalorder %s24, 1
      %p124 = por %p122, %p123
      %p126 = scmp.ne.s32.totalorder %s111, %s125
      %p127 = scmp.eq.s32.totalorder %s24, 0
      %p128 = por %p126, %p127
      %s129 = ssub.s32 %s25, %s37
      %s130 = ssub.s32 %s26, %s33
      %s131 = sor.u32 %s129, %s130
      %p132 = scmp.eq.s32.totalorder %s131, 0
      %s134 = sadd.s32 %s133, 1
      %s135 = scalar_select %p132, %s133, %s134
      %p138 = pneg %p132
      %p139 = scmp.eq.s32.totalorder %s18, 1
      %p140 = por %p138, %p139
      %p141 = scmp.ne.s32.totalorder %s133, %s136
      %p142 = scmp.eq.s32.totalorder %s18, 0
      %p143 = por %p141, %p142
      %p144 = scmp.ne.s32.totalorder %s133, %s136
      %p145 = scmp.eq.s32.totalorder %s23, 1
      %p146 = por %p144, %p145
      %p147 = scmp.ne.s32.totalorder %s136, %s137
      %p148 = scmp.eq.s32.totalorder %s23, 0
      %p149 = por %p147, %p148
      %p150 = scmp.ne.s32.totalorder %s136, %s137
      %p151 = scmp.eq.s32.totalorder %s24, 1
      %p152 = por %p150, %p151
      %p154 = scmp.ne.s32.totalorder %s137, %s153
      %p155 = scmp.eq.s32.totalorder %s24, 0
      %p156 = por %p154, %p155
      %p157 = scmp.le.s32.totalorder 1, %s18
      %p158 = scmp.lt.s32.totalorder %s18, 3
      %p159 = pnand %p157, %p158
      %p160 = pneg %p159
      // Predicated region
      $region9: #{tpu_custom_call.1} parent=5 // pred_check
        _
      $region10: #{tpu_custom_call.1} parent=5 // pred_check_branch
        %162 = sbr.rel (%p159) target = $region12
      $region11: #{tpu_custom_call.1} parent=5 // pred_region
        %s163 = ssub.s32 %s18, 1
        // Predicated region
        $region13: #{tpu_custom_call.1} parent=11 // pred_check
          %p164 = pneg %p79
        $region14: #{tpu_custom_call.1} parent=11 // pred_check_branch
          %166 = sbr.rel (%p164) target = $region16
        $region15: #{tpu_custom_call.1} parent=11 // pred_region
          %168 = vsyncadd [#allocation6], 0
          %s169 = sshll.u32 %s1, 4
          %s170 = int_to_ptr.hbm [resolvable:$true] %s169
          %s171 = sshll.u32 [#allocation5], 4
          %s172 = int_to_ptr.vmem [resolvable:$true] %s171
          %177 = dma.hbm_to_vmem [thread:$0]  %s170, 15360, %s172, [#allocation6], 64, 64, 4
        $region16: #{tpu_custom_call.1} parent=11 // pred_fallthru
          _
        // Predicated region
        $region17: #{tpu_custom_call.1} parent=11 // pred_check
          %p178 = pneg %p100
        $region18: #{tpu_custom_call.1} parent=11 // pred_check_branch
          %180 = sbr.rel (%p178) target = $region20
        $region19: #{tpu_custom_call.1} parent=11 // pred_region
          %182 = vsyncadd [#allocation6], 0
          %s183 = sshll.u32 %s2, 4
          %s184 = int_to_ptr.hbm [resolvable:$true] %s183
          %s185 = sshll.u32 [#allocation7], 4
          %s186 = int_to_ptr.vmem [resolvable:$true] %s185
          %191 = dma.hbm_to_vmem [thread:$0]  %s184, 1024, %s186, [#allocation6], 64, 64, 4
        $region20: #{tpu_custom_call.1} parent=11 // pred_fallthru
          _
        // Predicated region
        $region21: #{tpu_custom_call.1} parent=11 // pred_check
          %p192 = pneg %p121
        $region22: #{tpu_custom_call.1} parent=11 // pred_check_branch
          %194 = sbr.rel (%p192) target = $region24
        $region23: #{tpu_custom_call.1} parent=11 // pred_region
          %196 = vsyncadd [#allocation9], 0
          %s198 = sshll.u32 %s3, 4
          %s199 = int_to_ptr.hbm [resolvable:$true] %s198
          %s200 = sshll.u32 [#allocation8], 4
          %s201 = int_to_ptr.vmem [resolvable:$true] %s200
          %203 = dma.hbm_to_vmem [thread:$0]  %s199, 128, %s201, [#allocation9]
        $region24: #{tpu_custom_call.1} parent=11 // pred_fallthru
          _
      $region12: #{tpu_custom_call.1} parent=5 // pred_fallthru
        _
      %p204 = scmp.lt.s32.totalorder %s18, 2
      // Predicated region
      $region25: #{tpu_custom_call.1} parent=5 // pred_check
        %p205 = pneg %p204
      $region26: #{tpu_custom_call.1} parent=5 // pred_check_branch
        %207 = sbr.rel (%p205) target = $region28
      $region27: #{tpu_custom_call.1} parent=5 // pred_region
        // Predicated region
        $region29: #{tpu_custom_call.1} parent=27 // pred_check
          %p208 = pneg %p52
        $region30: #{tpu_custom_call.1} parent=27 // pred_check_branch
          %210 = sbr.rel (%p208) target = $region32
        $region31: #{tpu_custom_call.1} parent=27 // pred_region
          %s211 = sand.u32 %s42, 1
          %s212 = scalar_lea.sflag [#allocation3], %s211
          %s213 = sand.u32 %s42, 1
          %s214 = smul.addr %s213, 16
          %s215 = scalar_lea.vmem [#allocation2], %s214
          %217 = vsyncadd %s212, 0
          %s218 = smul.addr %s26, 4
          %s219 = smul.addr %s25, 4
          %s220 = sadd.s32 %s218, %s219
          %s221 = smul.addr %s220, 4
          %s222 = scalar_lea.hbm %s0, %s221
          %s223 = sshll.u32 %s222, 4
          %s224 = int_to_ptr.hbm [resolvable:$true] %s223
          %s225 = sshll.u32 %s215, 4
          %s226 = int_to_ptr.vmem [resolvable:$true] %s225
          %231 = dma.hbm_to_vmem [thread:$0]  %s224, 256, %s226, %s212, 64, 64, 4
        $region32: #{tpu_custom_call.1} parent=27 // pred_fallthru
          _
      $region28: #{tpu_custom_call.1} parent=5 // pred_fallthru
        _
      %p232 = scmp.le.s32.totalorder 1, %s18
      %p233 = scmp.lt.s32.totalorder %s18, 3
      %p234 = pnand %p232, %p233
      %p235 = pneg %p234
      // Predicated region
      $region33: #{tpu_custom_call.1} parent=5 // pred_check
        _
      $region34: #{tpu_custom_call.1} parent=5 // pred_check_branch
        %237 = sbr.rel (%p234) target = $region36
      $region35: #{tpu_custom_call.1} parent=5 // pred_region
        %s238 = ssub.s32 %s18, 1
        %s239 = sand.u32 %s45, 1
        %s240 = scalar_lea.sflag [#allocation3], %s239
        %s241 = sand.u32 %s45, 1
        %s242 = smul.addr %s241, 16
        %s243 = scalar_lea.vmem [#allocation2], %s242
        // Predicated region
        $region37: #{tpu_custom_call.1} parent=35 // pred_check
          %p244 = pneg %p58
        $region38: #{tpu_custom_call.1} parent=35 // pred_check_branch
          %246 = sbr.rel (%p244) target = $region40
        $region39: #{tpu_custom_call.1} parent=35 // pred_region
          %248 = dma.done %s240, 256
        $region40: #{tpu_custom_call.1} parent=35 // pred_fallthru
          _
        // Predicated region
        $region41: #{tpu_custom_call.1} parent=35 // pred_check
          %p249 = pneg %p79
        $region42: #{tpu_custom_call.1} parent=35 // pred_check_branch
          %251 = sbr.rel (%p249) target = $region44
        $region43: #{tpu_custom_call.1} parent=35 // pred_region
          %253 = dma.done [#allocation6], 15360
        $region44: #{tpu_custom_call.1} parent=35 // pred_fallthru
          _
        // Predicated region
        $region45: #{tpu_custom_call.1} parent=35 // pred_check
          %p254 = pneg %p100
        $region46: #{tpu_custom_call.1} parent=35 // pred_check_branch
          %256 = sbr.rel (%p254) target = $region48
        $region47: #{tpu_custom_call.1} parent=35 // pred_region
          %258 = dma.done [#allocation6], 1024
        $region48: #{tpu_custom_call.1} parent=35 // pred_fallthru
          _
        // Predicated region
        $region49: #{tpu_custom_call.1} parent=35 // pred_check
          %p259 = pneg %p121
        $region50: #{tpu_custom_call.1} parent=35 // pred_check_branch
          %261 = sbr.rel (%p259) target = $region52
        $region51: #{tpu_custom_call.1} parent=35 // pred_region
          %263 = dma.done [#allocation9], 128
        $region52: #{tpu_custom_call.1} parent=35 // pred_fallthru
          _
        %s264 = sand.u32 %s45, 1
        %s265 = scalar_lea.sflag [#allocation3], %s264
        %s266 = sand.u32 %s45, 1
        %s267 = smul.addr %s266, 16
        %s268 = scalar_lea.vmem [#allocation2], %s267
        %p269 = pneg %p58
        %p270 = pneg %p55
        %p271 = pneg %p79
        %p272 = pneg %p76
        %p273 = pneg %p100
        %p274 = pneg %p97
        %p275 = pneg %p121
        %p276 = pneg %p118
        %p277 = pneg %p149
        %p278 = pneg %p146
        %s279 = sand.u32 %s136, 1
        %s280 = scalar_lea.sflag [#allocation4], %s279
        %s281 = sand.u32 %s136, 1
        %s282 = smul.addr %s281, 16
        %s283 = scalar_lea.vmem [#allocation10], %s282
        %s284 = smul.u32 2, %s28
        %v285 = vld [vmem:[#allocation8] sm:$0x3f]
        %v286 = vld [vmem:[%s243] sm:$0xf]
        %v287 = vld [vmem:[%s243 + $0x4] sm:$0xf]
        %v288 = vld [vmem:[%s243 + $0x8] sm:$0xf]
        %v289 = vld [vmem:[%s243 + $0xc] sm:$0xf]
        %v290 = vunpack.c.l.bf16 %v286
        %v291 = vunpack.c.l.bf16 %v287
        %v292 = vunpack.c.l.bf16 %v288
        %v293 = vunpack.c.l.bf16 %v289
        %v294 = vpack.c.bf16 %v292, %v291
        %v295 = vld [vmem:[#allocation7] sm:$0xf]
        %v296 = vld [vmem:[#allocation7 + $0x4] sm:$0xf]
        %v297 = vld [vmem:[#allocation7 + $0x8] sm:$0xf]
        %v298 = vld [vmem:[#allocation7 + $0xc] sm:$0xf]
        %v299 = vld [vmem:[#allocation7 + $0x10] sm:$0xf]
        %v300 = vld [vmem:[#allocation7 + $0x14] sm:$0xf]
        %v301 = vld [vmem:[#allocation7 + $0x18] sm:$0xf]
        %v302 = vld [vmem:[#allocation7 + $0x1c] sm:$0xf]
        %v303 = vld [vmem:[#allocation7 + $0x20] sm:$0xf]
        %v304 = vld [vmem:[#allocation7 + $0x24] sm:$0xf]
        %v305 = vld [vmem:[#allocation7 + $0x28] sm:$0xf]
        %v306 = vld [vmem:[#allocation7 + $0x2c] sm:$0xf]
        %v307 = vld [vmem:[#allocation7 + $0x30] sm:$0xf]
        %v308 = vld [vmem:[#allocation7 + $0x34] sm:$0xf]
        %v309 = vld [vmem:[#allocation7 + $0x38] sm:$0xf]
        %v310 = vld [vmem:[#allocation7 + $0x3c] sm:$0xf]
        %v311 = vperm.slane %v285, 5
        %v328 = vunpack.c.l.b16 %v295
        %v329 = vunpack.c.l.b16 %v296
        %v330 = vunpack.c.l.b16 %v297
        %v331 = vunpack.c.l.b16 %v298
        %v332 = vunpack.c.l.b16 %v299
        %v333 = vunpack.c.l.b16 %v300
        %v334 = vunpack.c.l.b16 %v301
        %v335 = vunpack.c.l.b16 %v302
        %v336 = vunpack.c.l.b16 %v303
        %v337 = vunpack.c.l.b16 %v304
        %v338 = vunpack.c.l.b16 %v305
        %v339 = vunpack.c.l.b16 %v306
        %v340 = vunpack.c.l.b16 %v307
        %v341 = vunpack.c.l.b16 %v308
        %v342 = vunpack.c.l.b16 %v309
        %v343 = vunpack.c.l.b16 %v310
        %v344 = vpack.c.b16 %v329, %v328
        %v345 = vpack.c.b16 %v331, %v330
        %v346 = vpack.c.b16 %v333, %v332
        %v347 = vpack.c.b16 %v335, %v334
        %v348 = vpack.c.b16 %v337, %v336
        %v349 = vpack.c.b16 %v339, %v338
        %v350 = vpack.c.b16 %v341, %v340
        %v351 = vpack.c.b16 %v343, %v342
        %360 = vmatpush.bf16.msra.mxu0 %v351
        %361 = vmatpush.bf16.msra.mxu0 %v350
        %362 = vmatpush.bf16.msra.mxu0 %v349
        %363 = vmatpush.bf16.msra.mxu0 %v348
        %364 = vmatpush.bf16.msra.mxu0 %v347
        %365 = vmatpush.bf16.msra.mxu0 %v346
        %366 = vmatpush.bf16.msra.mxu0 %v345
        %367 = vmatpush.bf16.msra.mxu0 %v344
        %368 = vmatmul.bf16.gmra.mxu0 %v294
        %v369 = vpop.f32.mrf.mxu0
        %v370 = vadd.f32 %v311, %v369
        %v371 = vpop.f32.mrf.mxu0
        %v372 = vadd.f32 %v311, %v371
        %373 = vdwg.mxu0
        %s374 = smul.u32 %s28, 16
        %s375 = ssub.s32 %s374, 8
        %v376 = vlaneseq
        %v377 = vshrl.u32 %v376, 7
        %v378 = vadd.s32 %v377, 8
        %v379 = vadd.s32 %v377, 16
        %v380 = vadd.s32 %v377, 24
        %v381 = vstv %s375
        %v382 = vadd.s32 %v381, %v377
        %v383 = vadd.s32 %v381, %v378
        %v384 = vadd.s32 %v381, %v379
        %v385 = vadd.s32 %v381, %v380
        %vm386 = vcmp.ge.s32.totalorder %v382, 0
        %vm387 = vcmp.ge.s32.totalorder %v383, 0
        %vm388 = vcmp.ge.s32.totalorder %v384, 0
        %vm389 = vcmp.ge.s32.totalorder %v385, 0
        %vm390 = vcmp.lt.s32.totalorder %v382, 16
        %vm391 = vcmp.lt.s32.totalorder %v383, 16
        %vm392 = vcmp.lt.s32.totalorder %v384, 16
        %vm393 = vcmp.lt.s32.totalorder %v385, 16
        %vm394 = vmand %vm386, %vm390
        %vm395 = vmand %vm387, %vm391
        %vm396 = vmand %vm388, %vm392
        %vm397 = vmand %vm389, %vm393
        %v398 = vrot.slane %v290, 7
        %v399 = vrot.slane %v291, 7
        %v400 = vrot.slane %v292, 7
        %v401 = vrot.slane %v293, 7
        %vm402 = vcmp.lt.s32.totalorder %v377, 1
        %v403 = vsel %vm402, %v400, %v401
        %v404 = vsel %vm402, %v399, %v400
        %v405 = vsel %vm402, %v398, %v399
        %v406 = vsel %vm402, %v401, %v398
        %v407 = vpack.c.bf16 %v406, %v406
        %v408 = vpack.c.bf16 %v405, %v405
        %v409 = vpack.c.bf16 %v404, %v404
        %v410 = vpack.c.bf16 %v403, %v403
        %v411 = vrot.slane %v290, 1
        %v412 = vrot.slane %v291, 1
        %v413 = vrot.slane %v292, 1
        %v414 = vrot.slane %v293, 1
        %vm415 = vcmp.lt.s32.totalorder %v377, 7
        %v416 = vsel %vm415, %v413, %v414
        %v417 = vsel %vm415, %v412, %v413
        %v418 = vsel %vm415, %v411, %v412
        %v419 = vsel %vm415, %v414, %v411
        %v420 = vpack.c.bf16 %v418, %v418
        %v421 = vpack.c.bf16 %v417, %v417
        %v422 = vpack.c.bf16 %v416, %v416
        %v423 = vpack.c.bf16 %v419, %v419
        %v428 = vunpack.c.l.b16 %v407
        %v429 = vunpack.c.l.b16 %v408
        %v430 = vunpack.c.l.b16 %v409
        %v431 = vunpack.c.l.b16 %v410
        %v432 = vpack.c.b16 %v429, %v428
        %v433 = vpack.c.b16 %v431, %v430
        %v440 = vunpack.c.l.b16 %v286
        %v441 = vunpack.c.l.b16 %v287
        %v442 = vunpack.c.l.b16 %v288
        %v443 = vunpack.c.l.b16 %v289
        %v444 = vpack.c.b16 %v441, %v440
        %v445 = vpack.c.b16 %v443, %v442
        %v452 = vunpack.c.l.b16 %v420
        %v453 = vunpack.c.l.b16 %v421
        %v454 = vunpack.c.l.b16 %v422
        %v455 = vunpack.c.l.b16 %v423
        %v456 = vpack.c.b16 %v453, %v452
        %v457 = vpack.c.b16 %v455, %v454
        %v460 = vld [vmem:[#allocation5] sm:$0xf]
        %v461 = vld [vmem:[#allocation5 + $0x4] sm:$0xf]
        %v462 = vld [vmem:[#allocation5 + $0x8] sm:$0xf]
        %v463 = vld [vmem:[#allocation5 + $0xc] sm:$0xf]
        %v464 = vld [vmem:[#allocation5 + $0x10] sm:$0xf]
        %v465 = vld [vmem:[#allocation5 + $0x14] sm:$0xf]
        %v466 = vld [vmem:[#allocation5 + $0x18] sm:$0xf]
        %v467 = vld [vmem:[#allocation5 + $0x1c] sm:$0xf]
        %v468 = vld [vmem:[#allocation5 + $0x20] sm:$0xf]
        %v469 = vld [vmem:[#allocation5 + $0x24] sm:$0xf]
        %v470 = vld [vmem:[#allocation5 + $0x28] sm:$0xf]
        %v471 = vld [vmem:[#allocation5 + $0x2c] sm:$0xf]
        %v472 = vld [vmem:[#allocation5 + $0x30] sm:$0xf]
        %v473 = vld [vmem:[#allocation5 + $0x34] sm:$0xf]
        %v474 = vld [vmem:[#allocation5 + $0x38] sm:$0xf]
        %v475 = vld [vmem:[#allocation5 + $0x3c] sm:$0xf]
        %v476 = vld [vmem:[#allocation5 + $0x40] sm:$0xf]
        %v477 = vld [vmem:[#allocation5 + $0x44] sm:$0xf]
        %v478 = vld [vmem:[#allocation5 + $0x48] sm:$0xf]
        %v479 = vld [vmem:[#allocation5 + $0x4c] sm:$0xf]
        %v480 = vld [vmem:[#allocation5 + $0x50] sm:$0xf]
        %v481 = vld [vmem:[#allocation5 + $0x54] sm:$0xf]
        %v482 = vld [vmem:[#allocation5 + $0x58] sm:$0xf]
        %v483 = vld [vmem:[#allocation5 + $0x5c] sm:$0xf]
        %v484 = vld [vmem:[#allocation5 + $0x60] sm:$0xf]
        %v485 = vld [vmem:[#allocation5 + $0x64] sm:$0xf]
        %v486 = vld [vmem:[#allocation5 + $0x68] sm:$0xf]
        %v487 = vld [vmem:[#allocation5 + $0x6c] sm:$0xf]
        %v488 = vld [vmem:[#allocation5 + $0x70] sm:$0xf]
        %v489 = vld [vmem:[#allocation5 + $0x74] sm:$0xf]
        %v490 = vld [vmem:[#allocation5 + $0x78] sm:$0xf]
        %v491 = vld [vmem:[#allocation5 + $0x7c] sm:$0xf]
        %v492 = vld [vmem:[#allocation5 + $0x80] sm:$0xf]
        %v493 = vld [vmem:[#allocation5 + $0x84] sm:$0xf]
        %v494 = vld [vmem:[#allocation5 + $0x88] sm:$0xf]
        %v495 = vld [vmem:[#allocation5 + $0x8c] sm:$0xf]
        %v496 = vld [vmem:[#allocation5 + $0x90] sm:$0xf]
        %v497 = vld [vmem:[#allocation5 + $0x94] sm:$0xf]
        %v498 = vld [vmem:[#allocation5 + $0x98] sm:$0xf]
        %v499 = vld [vmem:[#allocation5 + $0x9c] sm:$0xf]
        %v500 = vld [vmem:[#allocation5 + $0xa0] sm:$0xf]
        %v501 = vld [vmem:[#allocation5 + $0xa4] sm:$0xf]
        %v502 = vld [vmem:[#allocation5 + $0xa8] sm:$0xf]
        %v503 = vld [vmem:[#allocation5 + $0xac] sm:$0xf]
        %v504 = vld [vmem:[#allocation5 + $0xb0] sm:$0xf]
        %v505 = vld [vmem:[#allocation5 + $0xb4] sm:$0xf]
        %v506 = vld [vmem:[#allocation5 + $0xb8] sm:$0xf]
        %v507 = vld [vmem:[#allocation5 + $0xbc] sm:$0xf]
        %v508 = vperm.slane %v285, 0
        %v557 = vunpack.c.l.b16 %v460
        %v558 = vunpack.c.l.b16 %v461
        %v559 = vunpack.c.l.b16 %v462
        %v560 = vunpack.c.l.b16 %v463
        %v561 = vunpack.c.l.b16 %v464
        %v562 = vunpack.c.l.b16 %v465
        %v563 = vunpack.c.l.b16 %v466
        %v564 = vunpack.c.l.b16 %v467
        %v565 = vunpack.c.l.b16 %v468
        %v566 = vunpack.c.l.b16 %v469
        %v567 = vunpack.c.l.b16 %v470
        %v568 = vunpack.c.l.b16 %v471
        %v569 = vunpack.c.l.b16 %v472
        %v570 = vunpack.c.l.b16 %v473
        %v571 = vunpack.c.l.b16 %v474
        %v572 = vunpack.c.l.b16 %v475
        %v573 = vunpack.c.l.b16 %v476
        %v574 = vunpack.c.l.b16 %v477
        %v575 = vunpack.c.l.b16 %v478
        %v576 = vunpack.c.l.b16 %v479
        %v577 = vunpack.c.l.b16 %v480
        %v578 = vunpack.c.l.b16 %v481
        %v579 = vunpack.c.l.b16 %v482
        %v580 = vunpack.c.l.b16 %v483
        %v581 = vunpack.c.l.b16 %v484
        %v582 = vunpack.c.l.b16 %v485
        %v583 = vunpack.c.l.b16 %v486
        %v584 = vunpack.c.l.b16 %v487
        %v585 = vunpack.c.l.b16 %v488
        %v586 = vunpack.c.l.b16 %v489
        %v587 = vunpack.c.l.b16 %v490
        %v588 = vunpack.c.l.b16 %v491
        %v589 = vunpack.c.l.b16 %v492
        %v590 = vunpack.c.l.b16 %v493
        %v591 = vunpack.c.l.b16 %v494
        %v592 = vunpack.c.l.b16 %v495
        %v593 = vunpack.c.l.b16 %v496
        %v594 = vunpack.c.l.b16 %v497
        %v595 = vunpack.c.l.b16 %v498
        %v596 = vunpack.c.l.b16 %v499
        %v597 = vunpack.c.l.b16 %v500
        %v598 = vunpack.c.l.b16 %v501
        %v599 = vunpack.c.l.b16 %v502
        %v600 = vunpack.c.l.b16 %v503
        %v601 = vunpack.c.l.b16 %v504
        %v602 = vunpack.c.l.b16 %v505
        %v603 = vunpack.c.l.b16 %v506
        %v604 = vunpack.c.l.b16 %v507
        %v605 = vpack.c.b16 %v558, %v557
        %v606 = vpack.c.b16 %v560, %v559
        %v607 = vpack.c.b16 %v562, %v561
        %v608 = vpack.c.b16 %v564, %v563
        %v609 = vpack.c.b16 %v566, %v565
        %v610 = vpack.c.b16 %v568, %v567
        %v611 = vpack.c.b16 %v570, %v569
        %v612 = vpack.c.b16 %v572, %v571
        %v613 = vpack.c.b16 %v574, %v573
        %v614 = vpack.c.b16 %v576, %v575
        %v615 = vpack.c.b16 %v578, %v577
        %v616 = vpack.c.b16 %v580, %v579
        %v617 = vpack.c.b16 %v582, %v581
        %v618 = vpack.c.b16 %v584, %v583
        %v619 = vpack.c.b16 %v586, %v585
        %v620 = vpack.c.b16 %v588, %v587
        %v621 = vpack.c.b16 %v590, %v589
        %v622 = vpack.c.b16 %v592, %v591
        %v623 = vpack.c.b16 %v594, %v593
        %v624 = vpack.c.b16 %v596, %v595
        %v625 = vpack.c.b16 %v598, %v597
        %v626 = vpack.c.b16 %v600, %v599
        %v627 = vpack.c.b16 %v602, %v601
        %v628 = vpack.c.b16 %v604, %v603
        %653 = vmatpush.bf16.msra.mxu0 %v612
        %654 = vmatpush.bf16.msra.mxu0 %v611
        %655 = vmatpush.bf16.msra.mxu0 %v610
        %656 = vmatpush.bf16.msra.mxu0 %v609
        %657 = vmatpush.bf16.msra.mxu0 %v608
        %658 = vmatpush.bf16.msra.mxu0 %v607
        %659 = vmatpush.bf16.msra.mxu0 %v606
        %660 = vmatpush.bf16.msra.mxu0 %v605
        %661 = vmatmul.bf16.gmra.mxu0 %v432
        %v662 = vpop.f32.mrf.mxu0
        %v663 = vadd.f32 %v508, %v662
        %v664 = vpop.f32.mrf.mxu0
        %v665 = vadd.f32 %v508, %v664
        %666 = vmatmul.bf16.gmra.mxu0 %v433
        %v667 = vpop.f32.mrf.mxu0
        %v668 = vadd.f32 %v508, %v667
        %v669 = vpop.f32.mrf.mxu0
        %v670 = vadd.f32 %v508, %v669
        %671 = vdwg.mxu0
        %672 = vmatpush.bf16.msra.mxu0 %v620
        %673 = vmatpush.bf16.msra.mxu0 %v619
        %674 = vmatpush.bf16.msra.mxu0 %v618
        %675 = vmatpush.bf16.msra.mxu0 %v617
        %676 = vmatpush.bf16.msra.mxu0 %v616
        %677 = vmatpush.bf16.msra.mxu0 %v615
        %678 = vmatpush.bf16.msra.mxu0 %v614
        %679 = vmatpush.bf16.msra.mxu0 %v613
        %680 = vmatmul.bf16.gmra.mxu0 %v444
        %v681 = vpop.f32.mrf.mxu0
        %v682 = vadd.f32 %v663, %v681
        %v683 = vpop.f32.mrf.mxu0
        %v684 = vadd.f32 %v665, %v683
        %685 = vmatmul.bf16.gmra.mxu0 %v445
        %v686 = vpop.f32.mrf.mxu0
        %v687 = vadd.f32 %v668, %v686
        %v688 = vpop.f32.mrf.mxu0
        %v689 = vadd.f32 %v670, %v688
        %690 = vdwg.mxu0
        %691 = vmatpush.bf16.msra.mxu0 %v628
        %692 = vmatpush.bf16.msra.mxu0 %v627
        %693 = vmatpush.bf16.msra.mxu0 %v626
        %694 = vmatpush.bf16.msra.mxu0 %v625
        %695 = vmatpush.bf16.msra.mxu0 %v624
        %696 = vmatpush.bf16.msra.mxu0 %v623
        %697 = vmatpush.bf16.msra.mxu0 %v622
        %698 = vmatpush.bf16.msra.mxu0 %v621
        %699 = vmatmul.bf16.gmra.mxu0 %v456
        %v700 = vpop.f32.mrf.mxu0
        %v701 = vadd.f32 %v682, %v700
        %v702 = vpop.f32.mrf.mxu0
        %v703 = vadd.f32 %v684, %v702
        %704 = vmatmul.bf16.gmra.mxu0 %v457
        %v705 = vpop.f32.mrf.mxu0
        %v706 = vadd.f32 %v687, %v705
        %v707 = vpop.f32.mrf.mxu0
        %v708 = vadd.f32 %v689, %v707
        %709 = vdwg.mxu0
        %v710 = vmax.f32 %v701, 0.0
        %v711 = vmax.f32 %v703, 0.0
        %v712 = vmax.f32 %v706, 0.0
        %v713 = vmax.f32 %v708, 0.0
        %v714 = vsel %vm394, 1, 0
        %v715 = vsel %vm395, 1, 0
        %v716 = vsel %vm396, 1, 0
        %v717 = vsel %vm397, 1, 0
        %vm718 = vcmp.eq.s32.totalorder %v714, 1
        %vm719 = vcmp.eq.s32.totalorder %v715, 1
        %vm720 = vcmp.eq.s32.totalorder %v716, 1
        %vm721 = vcmp.eq.s32.totalorder %v717, 1
        %v722 = vsel %vm718, %v710, 0.0
        %v723 = vsel %vm719, %v711, 0.0
        %v724 = vsel %vm720, %v712, 0.0
        %v725 = vsel %vm721, %v713, 0.0
        %v726 = vrot.slane %v722, 7
        %v727 = vrot.slane %v723, 7
        %v728 = vrot.slane %v724, 7
        %v729 = vrot.slane %v725, 7
        %v730 = vsel %vm402, %v728, %v729
        %v731 = vsel %vm402, %v727, %v728
        %v732 = vsel %vm402, %v726, %v727
        %v733 = vsel %vm402, %v729, %v726
        %v734 = vpack.c.bf16 %v733, %v733
        %v735 = vpack.c.bf16 %v732, %v732
        %v736 = vpack.c.bf16 %v731, %v731
        %v737 = vpack.c.bf16 %v730, %v730
        %v738 = vpack.c.bf16 %v722, %v722
        %v739 = vpack.c.bf16 %v723, %v723
        %v740 = vpack.c.bf16 %v724, %v724
        %v741 = vpack.c.bf16 %v725, %v725
        %v742 = vrot.slane %v722, 1
        %v743 = vrot.slane %v723, 1
        %v744 = vrot.slane %v724, 1
        %v745 = vrot.slane %v725, 1
        %v746 = vsel %vm415, %v744, %v745
        %v747 = vsel %vm415, %v743, %v744
        %v748 = vsel %vm415, %v742, %v743
        %v749 = vsel %vm415, %v745, %v742
        %v750 = vpack.c.bf16 %v748, %v748
        %v751 = vpack.c.bf16 %v747, %v747
        %v752 = vpack.c.bf16 %v746, %v746
        %v753 = vpack.c.bf16 %v749, %v749
        %v758 = vunpack.c.l.b16 %v734
        %v759 = vunpack.c.l.b16 %v735
        %v760 = vunpack.c.l.b16 %v736
        %v761 = vunpack.c.l.b16 %v737
        %v762 = vpack.c.b16 %v759, %v758
        %v763 = vpack.c.b16 %v761, %v760
        %v770 = vunpack.c.l.b16 %v738
        %v771 = vunpack.c.l.b16 %v739
        %v772 = vunpack.c.l.b16 %v740
        %v773 = vunpack.c.l.b16 %v741
        %v774 = vpack.c.b16 %v771, %v770
        %v775 = vpack.c.b16 %v773, %v772
        %v782 = vunpack.c.l.b16 %v750
        %v783 = vunpack.c.l.b16 %v751
        %v784 = vunpack.c.l.b16 %v752
        %v785 = vunpack.c.l.b16 %v753
        %v786 = vpack.c.b16 %v783, %v782
        %v787 = vpack.c.b16 %v785, %v784
        %s790 = scalar_lea.vmem [#allocation5], 192
        %v791 = vld [vmem:[%s790] sm:$0xf]
        %v792 = vld [vmem:[%s790 + $0x4] sm:$0xf]
        %v793 = vld [vmem:[%s790 + $0x8] sm:$0xf]
        %v794 = vld [vmem:[%s790 + $0xc] sm:$0xf]
        %v795 = vld [vmem:[%s790 + $0x10] sm:$0xf]
        %v796 = vld [vmem:[%s790 + $0x14] sm:$0xf]
        %v797 = vld [vmem:[%s790 + $0x18] sm:$0xf]
        %v798 = vld [vmem:[%s790 + $0x1c] sm:$0xf]
        %v799 = vld [vmem:[%s790 + $0x20] sm:$0xf]
        %v800 = vld [vmem:[%s790 + $0x24] sm:$0xf]
        %v801 = vld [vmem:[%s790 + $0x28] sm:$0xf]
        %v802 = vld [vmem:[%s790 + $0x2c] sm:$0xf]
        %v803 = vld [vmem:[%s790 + $0x30] sm:$0xf]
        %v804 = vld [vmem:[%s790 + $0x34] sm:$0xf]
        %v805 = vld [vmem:[%s790 + $0x38] sm:$0xf]
        %v806 = vld [vmem:[%s790 + $0x3c] sm:$0xf]
        %v807 = vld [vmem:[%s790 + $0x40] sm:$0xf]
        %v808 = vld [vmem:[%s790 + $0x44] sm:$0xf]
        %v809 = vld [vmem:[%s790 + $0x48] sm:$0xf]
        %v810 = vld [vmem:[%s790 + $0x4c] sm:$0xf]
        %v811 = vld [vmem:[%s790 + $0x50] sm:$0xf]
        %v812 = vld [vmem:[%s790 + $0x54] sm:$0xf]
        %v813 = vld [vmem:[%s790 + $0x58] sm:$0xf]
        %v814 = vld [vmem:[%s790 + $0x5c] sm:$0xf]
        %v815 = vld [vmem:[%s790 + $0x60] sm:$0xf]
        %v816 = vld [vmem:[%s790 + $0x64] sm:$0xf]
        %v817 = vld [vmem:[%s790 + $0x68] sm:$0xf]
        %v818 = vld [vmem:[%s790 + $0x6c] sm:$0xf]
        %v819 = vld [vmem:[%s790 + $0x70] sm:$0xf]
        %v820 = vld [vmem:[%s790 + $0x74] sm:$0xf]
        %v821 = vld [vmem:[%s790 + $0x78] sm:$0xf]
        %v822 = vld [vmem:[%s790 + $0x7c] sm:$0xf]
        %v823 = vld [vmem:[%s790 + $0x80] sm:$0xf]
        %v824 = vld [vmem:[%s790 + $0x84] sm:$0xf]
        %v825 = vld [vmem:[%s790 + $0x88] sm:$0xf]
        %v826 = vld [vmem:[%s790 + $0x8c] sm:$0xf]
        %v827 = vld [vmem:[%s790 + $0x90] sm:$0xf]
        %v828 = vld [vmem:[%s790 + $0x94] sm:$0xf]
        %v829 = vld [vmem:[%s790 + $0x98] sm:$0xf]
        %v830 = vld [vmem:[%s790 + $0x9c] sm:$0xf]
        %v831 = vld [vmem:[%s790 + $0xa0] sm:$0xf]
        %v832 = vld [vmem:[%s790 + $0xa4] sm:$0xf]
        %v833 = vld [vmem:[%s790 + $0xa8] sm:$0xf]
        %v834 = vld [vmem:[%s790 + $0xac] sm:$0xf]
        %v835 = vld [vmem:[%s790 + $0xb0] sm:$0xf]
        %v836 = vld [vmem:[%s790 + $0xb4] sm:$0xf]
        %v837 = vld [vmem:[%s790 + $0xb8] sm:$0xf]
        %v838 = vld [vmem:[%s790 + $0xbc] sm:$0xf]
        %v839 = vperm.slane %v285, 1
        %v888 = vunpack.c.l.b16 %v791
        %v889 = vunpack.c.l.b16 %v792
        %v890 = vunpack.c.l.b16 %v793
        %v891 = vunpack.c.l.b16 %v794
        %v892 = vunpack.c.l.b16 %v795
        %v893 = vunpack.c.l.b16 %v796
        %v894 = vunpack.c.l.b16 %v797
        %v895 = vunpack.c.l.b16 %v798
        %v896 = vunpack.c.l.b16 %v799
        %v897 = vunpack.c.l.b16 %v800
        %v898 = vunpack.c.l.b16 %v801
        %v899 = vunpack.c.l.b16 %v802
        %v900 = vunpack.c.l.b16 %v803
        %v901 = vunpack.c.l.b16 %v804
        %v902 = vunpack.c.l.b16 %v805
        %v903 = vunpack.c.l.b16 %v806
        %v904 = vunpack.c.l.b16 %v807
        %v905 = vunpack.c.l.b16 %v808
        %v906 = vunpack.c.l.b16 %v809
        %v907 = vunpack.c.l.b16 %v810
        %v908 = vunpack.c.l.b16 %v811
        %v909 = vunpack.c.l.b16 %v812
        %v910 = vunpack.c.l.b16 %v813
        %v911 = vunpack.c.l.b16 %v814
        %v912 = vunpack.c.l.b16 %v815
        %v913 = vunpack.c.l.b16 %v816
        %v914 = vunpack.c.l.b16 %v817
        %v915 = vunpack.c.l.b16 %v818
        %v916 = vunpack.c.l.b16 %v819
        %v917 = vunpack.c.l.b16 %v820
        %v918 = vunpack.c.l.b16 %v821
        %v919 = vunpack.c.l.b16 %v822
        %v920 = vunpack.c.l.b16 %v823
        %v921 = vunpack.c.l.b16 %v824
        %v922 = vunpack.c.l.b16 %v825
        %v923 = vunpack.c.l.b16 %v826
        %v924 = vunpack.c.l.b16 %v827
        %v925 = vunpack.c.l.b16 %v828
        %v926 = vunpack.c.l.b16 %v829
        %v927 = vunpack.c.l.b16 %v830
        %v928 = vunpack.c.l.b16 %v831
        %v929 = vunpack.c.l.b16 %v832
        %v930 = vunpack.c.l.b16 %v833
        %v931 = vunpack.c.l.b16 %v834
        %v932 = vunpack.c.l.b16 %v835
        %v933 = vunpack.c.l.b16 %v836
        %v934 = vunpack.c.l.b16 %v837
        %v935 = vunpack.c.l.b16 %v838
        %v936 = vpack.c.b16 %v889, %v888
        %v937 = vpack.c.b16 %v891, %v890
        %v938 = vpack.c.b16 %v893, %v892
        %v939 = vpack.c.b16 %v895, %v894
        %v940 = vpack.c.b16 %v897, %v896
        %v941 = vpack.c.b16 %v899, %v898
        %v942 = vpack.c.b16 %v901, %v900
        %v943 = vpack.c.b16 %v903, %v902
        %v944 = vpack.c.b16 %v905, %v904
        %v945 = vpack.c.b16 %v907, %v906
        %v946 = vpack.c.b16 %v909, %v908
        %v947 = vpack.c.b16 %v911, %v910
        %v948 = vpack.c.b16 %v913, %v912
        %v949 = vpack.c.b16 %v915, %v914
        %v950 = vpack.c.b16 %v917, %v916
        %v951 = vpack.c.b16 %v919, %v918
        %v952 = vpack.c.b16 %v921, %v920
        %v953 = vpack.c.b16 %v923, %v922
        %v954 = vpack.c.b16 %v925, %v924
        %v955 = vpack.c.b16 %v927, %v926
        %v956 = vpack.c.b16 %v929, %v928
        %v957 = vpack.c.b16 %v931, %v930
        %v958 = vpack.c.b16 %v933, %v932
        %v959 = vpack.c.b16 %v935, %v934
        %984 = vmatpush.bf16.msra.mxu0 %v943
        %985 = vmatpush.bf16.msra.mxu0 %v942
        %986 = vmatpush.bf16.msra.mxu0 %v941
        %987 = vmatpush.bf16.msra.mxu0 %v940
        %988 = vmatpush.bf16.msra.mxu0 %v939
        %989 = vmatpush.bf16.msra.mxu0 %v938
        %990 = vmatpush.bf16.msra.mxu0 %v937
        %991 = vmatpush.bf16.msra.mxu0 %v936
        %992 = vmatmul.bf16.gmra.mxu0 %v762
        %v993 = vpop.f32.mrf.mxu0
        %v994 = vadd.f32 %v839, %v993
        %v995 = vpop.f32.mrf.mxu0
        %v996 = vadd.f32 %v839, %v995
        %997 = vmatmul.bf16.gmra.mxu0 %v763
        %v998 = vpop.f32.mrf.mxu0
        %v999 = vadd.f32 %v839, %v998
        %v1000 = vpop.f32.mrf.mxu0
        %v1001 = vadd.f32 %v839, %v1000
        %1002 = vdwg.mxu0
        %1003 = vmatpush.bf16.msra.mxu0 %v951
        %1004 = vmatpush.bf16.msra.mxu0 %v950
        %1005 = vmatpush.bf16.msra.mxu0 %v949
        %1006 = vmatpush.bf16.msra.mxu0 %v948
        %1007 = vmatpush.bf16.msra.mxu0 %v947
        %1008 = vmatpush.bf16.msra.mxu0 %v946
        %1009 = vmatpush.bf16.msra.mxu0 %v945
        %1010 = vmatpush.bf16.msra.mxu0 %v944
        %1011 = vmatmul.bf16.gmra.mxu0 %v774
        %v1012 = vpop.f32.mrf.mxu0
        %v1013 = vadd.f32 %v994, %v1012
        %v1014 = vpop.f32.mrf.mxu0
        %v1015 = vadd.f32 %v996, %v1014
        %1016 = vmatmul.bf16.gmra.mxu0 %v775
        %v1017 = vpop.f32.mrf.mxu0
        %v1018 = vadd.f32 %v999, %v1017
        %v1019 = vpop.f32.mrf.mxu0
        %v1020 = vadd.f32 %v1001, %v1019
        %1021 = vdwg.mxu0
        %1022 = vmatpush.bf16.msra.mxu0 %v959
        %1023 = vmatpush.bf16.msra.mxu0 %v958
        %1024 = vmatpush.bf16.msra.mxu0 %v957
        %1025 = vmatpush.bf16.msra.mxu0 %v956
        %1026 = vmatpush.bf16.msra.mxu0 %v955
        %1027 = vmatpush.bf16.msra.mxu0 %v954
        %1028 = vmatpush.bf16.msra.mxu0 %v953
        %1029 = vmatpush.bf16.msra.mxu0 %v952
        %1030 = vmatmul.bf16.gmra.mxu0 %v786
        %v1031 = vpop.f32.mrf.mxu0
        %v1032 = vadd.f32 %v1013, %v1031
        %v1033 = vpop.f32.mrf.mxu0
        %v1034 = vadd.f32 %v1015, %v1033
        %1035 = vmatmul.bf16.gmra.mxu0 %v787
        %v1036 = vpop.f32.mrf.mxu0
        %v1037 = vadd.f32 %v1018, %v1036
        %v1038 = vpop.f32.mrf.mxu0
        %v1039 = vadd.f32 %v1020, %v1038
        %1040 = vdwg.mxu0
        %v1041 = vmax.f32 %v1032, 0.0
        %v1042 = vmax.f32 %v1034, 0.0
        %v1043 = vmax.f32 %v1037, 0.0
        %v1044 = vmax.f32 %v1039, 0.0
        %v1045 = vsel %vm718, %v1041, 0.0
        %v1046 = vsel %vm719, %v1042, 0.0
        %v1047 = vsel %vm720, %v1043, 0.0
        %v1048 = vsel %vm721, %v1044, 0.0
        %v1049 = vrot.slane %v1045, 7
        %v1050 = vrot.slane %v1046, 7
        %v1051 = vrot.slane %v1047, 7
        %v1052 = vrot.slane %v1048, 7
        %v1053 = vsel %vm402, %v1051, %v1052
        %v1054 = vsel %vm402, %v1050, %v1051
        %v1055 = vsel %vm402, %v1049, %v1050
        %v1056 = vsel %vm402, %v1052, %v1049
        %v1057 = vpack.c.bf16 %v1056, %v1056
        %v1058 = vpack.c.bf16 %v1055, %v1055
        %v1059 = vpack.c.bf16 %v1054, %v1054
        %v1060 = vpack.c.bf16 %v1053, %v1053
        %v1061 = vpack.c.bf16 %v1045, %v1045
        %v1062 = vpack.c.bf16 %v1046, %v1046
        %v1063 = vpack.c.bf16 %v1047, %v1047
        %v1064 = vpack.c.bf16 %v1048, %v1048
        %v1065 = vrot.slane %v1045, 1
        %v1066 = vrot.slane %v1046, 1
        %v1067 = vrot.slane %v1047, 1
        %v1068 = vrot.slane %v1048, 1
        %v1069 = vsel %vm415, %v1067, %v1068
        %v1070 = vsel %vm415, %v1066, %v1067
        %v1071 = vsel %vm415, %v1065, %v1066
        %v1072 = vsel %vm415, %v1068, %v1065
        %v1073 = vpack.c.bf16 %v1071, %v1071
        %v1074 = vpack.c.bf16 %v1070, %v1070
        %v1075 = vpack.c.bf16 %v1069, %v1069
        %v1076 = vpack.c.bf16 %v1072, %v1072
        %v1081 = vunpack.c.l.b16 %v1057
        %v1082 = vunpack.c.l.b16 %v1058
        %v1083 = vunpack.c.l.b16 %v1059
        %v1084 = vunpack.c.l.b16 %v1060
        %v1085 = vpack.c.b16 %v1082, %v1081
        %v1086 = vpack.c.b16 %v1084, %v1083
        %v1093 = vunpack.c.l.b16 %v1061
        %v1094 = vunpack.c.l.b16 %v1062
        %v1095 = vunpack.c.l.b16 %v1063
        %v1096 = vunpack.c.l.b16 %v1064
        %v1097 = vpack.c.b16 %v1094, %v1093
        %v1098 = vpack.c.b16 %v1096, %v1095
        %v1105 = vunpack.c.l.b16 %v1073
        %v1106 = vunpack.c.l.b16 %v1074
        %v1107 = vunpack.c.l.b16 %v1075
        %v1108 = vunpack.c.l.b16 %v1076
        %v1109 = vpack.c.b16 %v1106, %v1105
        %v1110 = vpack.c.b16 %v1108, %v1107
        %s1113 = scalar_lea.vmem [#allocation5], 384
        %v1114 = vld [vmem:[%s1113] sm:$0xf]
        %v1115 = vld [vmem:[%s1113 + $0x4] sm:$0xf]
        %v1116 = vld [vmem:[%s1113 + $0x8] sm:$0xf]
        %v1117 = vld [vmem:[%s1113 + $0xc] sm:$0xf]
        %v1118 = vld [vmem:[%s1113 + $0x10] sm:$0xf]
        %v1119 = vld [vmem:[%s1113 + $0x14] sm:$0xf]
        %v1120 = vld [vmem:[%s1113 + $0x18] sm:$0xf]
        %v1121 = vld [vmem:[%s1113 + $0x1c] sm:$0xf]
        %v1122 = vld [vmem:[%s1113 + $0x20] sm:$0xf]
        %v1123 = vld [vmem:[%s1113 + $0x24] sm:$0xf]
        %v1124 = vld [vmem:[%s1113 + $0x28] sm:$0xf]
        %v1125 = vld [vmem:[%s1113 + $0x2c] sm:$0xf]
        %v1126 = vld [vmem:[%s1113 + $0x30] sm:$0xf]
        %v1127 = vld [vmem:[%s1113 + $0x34] sm:$0xf]
        %v1128 = vld [vmem:[%s1113 + $0x38] sm:$0xf]
        %v1129 = vld [vmem:[%s1113 + $0x3c] sm:$0xf]
        %v1130 = vld [vmem:[%s1113 + $0x40] sm:$0xf]
        %v1131 = vld [vmem:[%s1113 + $0x44] sm:$0xf]
        %v1132 = vld [vmem:[%s1113 + $0x48] sm:$0xf]
        %v1133 = vld [vmem:[%s1113 + $0x4c] sm:$0xf]
        %v1134 = vld [vmem:[%s1113 + $0x50] sm:$0xf]
        %v1135 = vld [vmem:[%s1113 + $0x54] sm:$0xf]
        %v1136 = vld [vmem:[%s1113 + $0x58] sm:$0xf]
        %v1137 = vld [vmem:[%s1113 + $0x5c] sm:$0xf]
        %v1138 = vld [vmem:[%s1113 + $0x60] sm:$0xf]
        %v1139 = vld [vmem:[%s1113 + $0x64] sm:$0xf]
        %v1140 = vld [vmem:[%s1113 + $0x68] sm:$0xf]
        %v1141 = vld [vmem:[%s1113 + $0x6c] sm:$0xf]
        %v1142 = vld [vmem:[%s1113 + $0x70] sm:$0xf]
        %v1143 = vld [vmem:[%s1113 + $0x74] sm:$0xf]
        %v1144 = vld [vmem:[%s1113 + $0x78] sm:$0xf]
        %v1145 = vld [vmem:[%s1113 + $0x7c] sm:$0xf]
        %v1146 = vld [vmem:[%s1113 + $0x80] sm:$0xf]
        %v1147 = vld [vmem:[%s1113 + $0x84] sm:$0xf]
        %v1148 = vld [vmem:[%s1113 + $0x88] sm:$0xf]
        %v1149 = vld [vmem:[%s1113 + $0x8c] sm:$0xf]
        %v1150 = vld [vmem:[%s1113 + $0x90] sm:$0xf]
        %v1151 = vld [vmem:[%s1113 + $0x94] sm:$0xf]
        %v1152 = vld [vmem:[%s1113 + $0x98] sm:$0xf]
        %v1153 = vld [vmem:[%s1113 + $0x9c] sm:$0xf]
        %v1154 = vld [vmem:[%s1113 + $0xa0] sm:$0xf]
        %v1155 = vld [vmem:[%s1113 + $0xa4] sm:$0xf]
        %v1156 = vld [vmem:[%s1113 + $0xa8] sm:$0xf]
        %v1157 = vld [vmem:[%s1113 + $0xac] sm:$0xf]
        %v1158 = vld [vmem:[%s1113 + $0xb0] sm:$0xf]
        %v1159 = vld [vmem:[%s1113 + $0xb4] sm:$0xf]
        %v1160 = vld [vmem:[%s1113 + $0xb8] sm:$0xf]
        %v1161 = vld [vmem:[%s1113 + $0xbc] sm:$0xf]
        %v1162 = vperm.slane %v285, 2
        %v1211 = vunpack.c.l.b16 %v1114
        %v1212 = vunpack.c.l.b16 %v1115
        %v1213 = vunpack.c.l.b16 %v1116
        %v1214 = vunpack.c.l.b16 %v1117
        %v1215 = vunpack.c.l.b16 %v1118
        %v1216 = vunpack.c.l.b16 %v1119
        %v1217 = vunpack.c.l.b16 %v1120
        %v1218 = vunpack.c.l.b16 %v1121
        %v1219 = vunpack.c.l.b16 %v1122
        %v1220 = vunpack.c.l.b16 %v1123
        %v1221 = vunpack.c.l.b16 %v1124
        %v1222 = vunpack.c.l.b16 %v1125
        %v1223 = vunpack.c.l.b16 %v1126
        %v1224 = vunpack.c.l.b16 %v1127
        %v1225 = vunpack.c.l.b16 %v1128
        %v1226 = vunpack.c.l.b16 %v1129
        %v1227 = vunpack.c.l.b16 %v1130
        %v1228 = vunpack.c.l.b16 %v1131
        %v1229 = vunpack.c.l.b16 %v1132
        %v1230 = vunpack.c.l.b16 %v1133
        %v1231 = vunpack.c.l.b16 %v1134
        %v1232 = vunpack.c.l.b16 %v1135
        %v1233 = vunpack.c.l.b16 %v1136
        %v1234 = vunpack.c.l.b16 %v1137
        %v1235 = vunpack.c.l.b16 %v1138
        %v1236 = vunpack.c.l.b16 %v1139
        %v1237 = vunpack.c.l.b16 %v1140
        %v1238 = vunpack.c.l.b16 %v1141
        %v1239 = vunpack.c.l.b16 %v1142
        %v1240 = vunpack.c.l.b16 %v1143
        %v1241 = vunpack.c.l.b16 %v1144
        %v1242 = vunpack.c.l.b16 %v1145
        %v1243 = vunpack.c.l.b16 %v1146
        %v1244 = vunpack.c.l.b16 %v1147
        %v1245 = vunpack.c.l.b16 %v1148
        %v1246 = vunpack.c.l.b16 %v1149
        %v1247 = vunpack.c.l.b16 %v1150
        %v1248 = vunpack.c.l.b16 %v1151
        %v1249 = vunpack.c.l.b16 %v1152
        %v1250 = vunpack.c.l.b16 %v1153
        %v1251 = vunpack.c.l.b16 %v1154
        %v1252 = vunpack.c.l.b16 %v1155
        %v1253 = vunpack.c.l.b16 %v1156
        %v1254 = vunpack.c.l.b16 %v1157
        %v1255 = vunpack.c.l.b16 %v1158
        %v1256 = vunpack.c.l.b16 %v1159
        %v1257 = vunpack.c.l.b16 %v1160
        %v1258 = vunpack.c.l.b16 %v1161
        %v1259 = vpack.c.b16 %v1212, %v1211
        %v1260 = vpack.c.b16 %v1214, %v1213
        %v1261 = vpack.c.b16 %v1216, %v1215
        %v1262 = vpack.c.b16 %v1218, %v1217
        %v1263 = vpack.c.b16 %v1220, %v1219
        %v1264 = vpack.c.b16 %v1222, %v1221
        %v1265 = vpack.c.b16 %v1224, %v1223
        %v1266 = vpack.c.b16 %v1226, %v1225
        %v1267 = vpack.c.b16 %v1228, %v1227
        %v1268 = vpack.c.b16 %v1230, %v1229
        %v1269 = vpack.c.b16 %v1232, %v1231
        %v1270 = vpack.c.b16 %v1234, %v1233
        %v1271 = vpack.c.b16 %v1236, %v1235
        %v1272 = vpack.c.b16 %v1238, %v1237
        %v1273 = vpack.c.b16 %v1240, %v1239
        %v1274 = vpack.c.b16 %v1242, %v1241
        %v1275 = vpack.c.b16 %v1244, %v1243
        %v1276 = vpack.c.b16 %v1246, %v1245
        %v1277 = vpack.c.b16 %v1248, %v1247
        %v1278 = vpack.c.b16 %v1250, %v1249
        %v1279 = vpack.c.b16 %v1252, %v1251
        %v1280 = vpack.c.b16 %v1254, %v1253
        %v1281 = vpack.c.b16 %v1256, %v1255
        %v1282 = vpack.c.b16 %v1258, %v1257
        %1307 = vmatpush.bf16.msra.mxu0 %v1266
        %1308 = vmatpush.bf16.msra.mxu0 %v1265
        %1309 = vmatpush.bf16.msra.mxu0 %v1264
        %1310 = vmatpush.bf16.msra.mxu0 %v1263
        %1311 = vmatpush.bf16.msra.mxu0 %v1262
        %1312 = vmatpush.bf16.msra.mxu0 %v1261
        %1313 = vmatpush.bf16.msra.mxu0 %v1260
        %1314 = vmatpush.bf16.msra.mxu0 %v1259
        %1315 = vmatmul.bf16.gmra.mxu0 %v1085
        %v1316 = vpop.f32.mrf.mxu0
        %v1317 = vadd.f32 %v1162, %v1316
        %v1318 = vpop.f32.mrf.mxu0
        %v1319 = vadd.f32 %v1162, %v1318
        %1320 = vmatmul.bf16.gmra.mxu0 %v1086
        %v1321 = vpop.f32.mrf.mxu0
        %v1322 = vadd.f32 %v1162, %v1321
        %v1323 = vpop.f32.mrf.mxu0
        %v1324 = vadd.f32 %v1162, %v1323
        %1325 = vdwg.mxu0
        %1326 = vmatpush.bf16.msra.mxu0 %v1274
        %1327 = vmatpush.bf16.msra.mxu0 %v1273
        %1328 = vmatpush.bf16.msra.mxu0 %v1272
        %1329 = vmatpush.bf16.msra.mxu0 %v1271
        %1330 = vmatpush.bf16.msra.mxu0 %v1270
        %1331 = vmatpush.bf16.msra.mxu0 %v1269
        %1332 = vmatpush.bf16.msra.mxu0 %v1268
        %1333 = vmatpush.bf16.msra.mxu0 %v1267
        %1334 = vmatmul.bf16.gmra.mxu0 %v1097
        %v1335 = vpop.f32.mrf.mxu0
        %v1336 = vadd.f32 %v1317, %v1335
        %v1337 = vpop.f32.mrf.mxu0
        %v1338 = vadd.f32 %v1319, %v1337
        %1339 = vmatmul.bf16.gmra.mxu0 %v1098
        %v1340 = vpop.f32.mrf.mxu0
        %v1341 = vadd.f32 %v1322, %v1340
        %v1342 = vpop.f32.mrf.mxu0
        %v1343 = vadd.f32 %v1324, %v1342
        %1344 = vdwg.mxu0
        %1345 = vmatpush.bf16.msra.mxu0 %v1282
        %1346 = vmatpush.bf16.msra.mxu0 %v1281
        %1347 = vmatpush.bf16.msra.mxu0 %v1280
        %1348 = vmatpush.bf16.msra.mxu0 %v1279
        %1349 = vmatpush.bf16.msra.mxu0 %v1278
        %1350 = vmatpush.bf16.msra.mxu0 %v1277
        %1351 = vmatpush.bf16.msra.mxu0 %v1276
        %1352 = vmatpush.bf16.msra.mxu0 %v1275
        %1353 = vmatmul.bf16.gmra.mxu0 %v1109
        %v1354 = vpop.f32.mrf.mxu0
        %v1355 = vadd.f32 %v1336, %v1354
        %v1356 = vpop.f32.mrf.mxu0
        %v1357 = vadd.f32 %v1338, %v1356
        %1358 = vmatmul.bf16.gmra.mxu0 %v1110
        %v1359 = vpop.f32.mrf.mxu0
        %v1360 = vadd.f32 %v1341, %v1359
        %v1361 = vpop.f32.mrf.mxu0
        %v1362 = vadd.f32 %v1343, %v1361
        %1363 = vdwg.mxu0
        %v1364 = vmax.f32 %v1355, 0.0
        %v1365 = vmax.f32 %v1357, 0.0
        %v1366 = vmax.f32 %v1360, 0.0
        %v1367 = vmax.f32 %v1362, 0.0
        %v1368 = vsel %vm718, %v1364, 0.0
        %v1369 = vsel %vm719, %v1365, 0.0
        %v1370 = vsel %vm720, %v1366, 0.0
        %v1371 = vsel %vm721, %v1367, 0.0
        %v1372 = vrot.slane %v1368, 7
        %v1373 = vrot.slane %v1369, 7
        %v1374 = vrot.slane %v1370, 7
        %v1375 = vrot.slane %v1371, 7
        %v1376 = vsel %vm402, %v1374, %v1375
        %v1377 = vsel %vm402, %v1373, %v1374
        %v1378 = vsel %vm402, %v1372, %v1373
        %v1379 = vsel %vm402, %v1375, %v1372
        %v1380 = vpack.c.bf16 %v1379, %v1379
        %v1381 = vpack.c.bf16 %v1378, %v1378
        %v1382 = vpack.c.bf16 %v1377, %v1377
        %v1383 = vpack.c.bf16 %v1376, %v1376
        %v1384 = vpack.c.bf16 %v1368, %v1368
        %v1385 = vpack.c.bf16 %v1369, %v1369
        %v1386 = vpack.c.bf16 %v1370, %v1370
        %v1387 = vpack.c.bf16 %v1371, %v1371
        %v1388 = vrot.slane %v1368, 1
        %v1389 = vrot.slane %v1369, 1
        %v1390 = vrot.slane %v1370, 1
        %v1391 = vrot.slane %v1371, 1
        %v1392 = vsel %vm415, %v1390, %v1391
        %v1393 = vsel %vm415, %v1389, %v1390
        %v1394 = vsel %vm415, %v1388, %v1389
        %v1395 = vsel %vm415, %v1391, %v1388
        %v1396 = vpack.c.bf16 %v1394, %v1394
        %v1397 = vpack.c.bf16 %v1393, %v1393
        %v1398 = vpack.c.bf16 %v1392, %v1392
        %v1399 = vpack.c.bf16 %v1395, %v1395
        %v1404 = vunpack.c.l.b16 %v1380
        %v1405 = vunpack.c.l.b16 %v1381
        %v1406 = vunpack.c.l.b16 %v1382
        %v1407 = vunpack.c.l.b16 %v1383
        %v1408 = vpack.c.b16 %v1405, %v1404
        %v1409 = vpack.c.b16 %v1407, %v1406
        %v1416 = vunpack.c.l.b16 %v1384
        %v1417 = vunpack.c.l.b16 %v1385
        %v1418 = vunpack.c.l.b16 %v1386
        %v1419 = vunpack.c.l.b16 %v1387
        %v1420 = vpack.c.b16 %v1417, %v1416
        %v1421 = vpack.c.b16 %v1419, %v1418
        %v1428 = vunpack.c.l.b16 %v1396
        %v1429 = vunpack.c.l.b16 %v1397
        %v1430 = vunpack.c.l.b16 %v1398
        %v1431 = vunpack.c.l.b16 %v1399
        %v1432 = vpack.c.b16 %v1429, %v1428
        %v1433 = vpack.c.b16 %v1431, %v1430
        %s1436 = scalar_lea.vmem [#allocation5], 576
        %v1437 = vld [vmem:[%s1436] sm:$0xf]
        %v1438 = vld [vmem:[%s1436 + $0x4] sm:$0xf]
        %v1439 = vld [vmem:[%s1436 + $0x8] sm:$0xf]
        %v1440 = vld [vmem:[%s1436 + $0xc] sm:$0xf]
        %v1441 = vld [vmem:[%s1436 + $0x10] sm:$0xf]
        %v1442 = vld [vmem:[%s1436 + $0x14] sm:$0xf]
        %v1443 = vld [vmem:[%s1436 + $0x18] sm:$0xf]
        %v1444 = vld [vmem:[%s1436 + $0x1c] sm:$0xf]
        %v1445 = vld [vmem:[%s1436 + $0x20] sm:$0xf]
        %v1446 = vld [vmem:[%s1436 + $0x24] sm:$0xf]
        %v1447 = vld [vmem:[%s1436 + $0x28] sm:$0xf]
        %v1448 = vld [vmem:[%s1436 + $0x2c] sm:$0xf]
        %v1449 = vld [vmem:[%s1436 + $0x30] sm:$0xf]
        %v1450 = vld [vmem:[%s1436 + $0x34] sm:$0xf]
        %v1451 = vld [vmem:[%s1436 + $0x38] sm:$0xf]
        %v1452 = vld [vmem:[%s1436 + $0x3c] sm:$0xf]
        %v1453 = vld [vmem:[%s1436 + $0x40] sm:$0xf]
        %v1454 = vld [vmem:[%s1436 + $0x44] sm:$0xf]
        %v1455 = vld [vmem:[%s1436 + $0x48] sm:$0xf]
        %v1456 = vld [vmem:[%s1436 + $0x4c] sm:$0xf]
        %v1457 = vld [vmem:[%s1436 + $0x50] sm:$0xf]
        %v1458 = vld [vmem:[%s1436 + $0x54] sm:$0xf]
        %v1459 = vld [vmem:[%s1436 + $0x58] sm:$0xf]
        %v1460 = vld [vmem:[%s1436 + $0x5c] sm:$0xf]
        %v1461 = vld [vmem:[%s1436 + $0x60] sm:$0xf]
        %v1462 = vld [vmem:[%s1436 + $0x64] sm:$0xf]
        %v1463 = vld [vmem:[%s1436 + $0x68] sm:$0xf]
        %v1464 = vld [vmem:[%s1436 + $0x6c] sm:$0xf]
        %v1465 = vld [vmem:[%s1436 + $0x70] sm:$0xf]
        %v1466 = vld [vmem:[%s1436 + $0x74] sm:$0xf]
        %v1467 = vld [vmem:[%s1436 + $0x78] sm:$0xf]
        %v1468 = vld [vmem:[%s1436 + $0x7c] sm:$0xf]
        %v1469 = vld [vmem:[%s1436 + $0x80] sm:$0xf]
        %v1470 = vld [vmem:[%s1436 + $0x84] sm:$0xf]
        %v1471 = vld [vmem:[%s1436 + $0x88] sm:$0xf]
        %v1472 = vld [vmem:[%s1436 + $0x8c] sm:$0xf]
        %v1473 = vld [vmem:[%s1436 + $0x90] sm:$0xf]
        %v1474 = vld [vmem:[%s1436 + $0x94] sm:$0xf]
        %v1475 = vld [vmem:[%s1436 + $0x98] sm:$0xf]
        %v1476 = vld [vmem:[%s1436 + $0x9c] sm:$0xf]
        %v1477 = vld [vmem:[%s1436 + $0xa0] sm:$0xf]
        %v1478 = vld [vmem:[%s1436 + $0xa4] sm:$0xf]
        %v1479 = vld [vmem:[%s1436 + $0xa8] sm:$0xf]
        %v1480 = vld [vmem:[%s1436 + $0xac] sm:$0xf]
        %v1481 = vld [vmem:[%s1436 + $0xb0] sm:$0xf]
        %v1482 = vld [vmem:[%s1436 + $0xb4] sm:$0xf]
        %v1483 = vld [vmem:[%s1436 + $0xb8] sm:$0xf]
        %v1484 = vld [vmem:[%s1436 + $0xbc] sm:$0xf]
        %v1485 = vperm.slane %v285, 3
        %v1534 = vunpack.c.l.b16 %v1437
        %v1535 = vunpack.c.l.b16 %v1438
        %v1536 = vunpack.c.l.b16 %v1439
        %v1537 = vunpack.c.l.b16 %v1440
        %v1538 = vunpack.c.l.b16 %v1441
        %v1539 = vunpack.c.l.b16 %v1442
        %v1540 = vunpack.c.l.b16 %v1443
        %v1541 = vunpack.c.l.b16 %v1444
        %v1542 = vunpack.c.l.b16 %v1445
        %v1543 = vunpack.c.l.b16 %v1446
        %v1544 = vunpack.c.l.b16 %v1447
        %v1545 = vunpack.c.l.b16 %v1448
        %v1546 = vunpack.c.l.b16 %v1449
        %v1547 = vunpack.c.l.b16 %v1450
        %v1548 = vunpack.c.l.b16 %v1451
        %v1549 = vunpack.c.l.b16 %v1452
        %v1550 = vunpack.c.l.b16 %v1453
        %v1551 = vunpack.c.l.b16 %v1454
        %v1552 = vunpack.c.l.b16 %v1455
        %v1553 = vunpack.c.l.b16 %v1456
        %v1554 = vunpack.c.l.b16 %v1457
        %v1555 = vunpack.c.l.b16 %v1458
        %v1556 = vunpack.c.l.b16 %v1459
        %v1557 = vunpack.c.l.b16 %v1460
        %v1558 = vunpack.c.l.b16 %v1461
        %v1559 = vunpack.c.l.b16 %v1462
        %v1560 = vunpack.c.l.b16 %v1463
        %v1561 = vunpack.c.l.b16 %v1464
        %v1562 = vunpack.c.l.b16 %v1465
        %v1563 = vunpack.c.l.b16 %v1466
        %v1564 = vunpack.c.l.b16 %v1467
        %v1565 = vunpack.c.l.b16 %v1468
        %v1566 = vunpack.c.l.b16 %v1469
        %v1567 = vunpack.c.l.b16 %v1470
        %v1568 = vunpack.c.l.b16 %v1471
        %v1569 = vunpack.c.l.b16 %v1472
        %v1570 = vunpack.c.l.b16 %v1473
        %v1571 = vunpack.c.l.b16 %v1474
        %v1572 = vunpack.c.l.b16 %v1475
        %v1573 = vunpack.c.l.b16 %v1476
        %v1574 = vunpack.c.l.b16 %v1477
        %v1575 = vunpack.c.l.b16 %v1478
        %v1576 = vunpack.c.l.b16 %v1479
        %v1577 = vunpack.c.l.b16 %v1480
        %v1578 = vunpack.c.l.b16 %v1481
        %v1579 = vunpack.c.l.b16 %v1482
        %v1580 = vunpack.c.l.b16 %v1483
        %v1581 = vunpack.c.l.b16 %v1484
        %v1582 = vpack.c.b16 %v1535, %v1534
        %v1583 = vpack.c.b16 %v1537, %v1536
        %v1584 = vpack.c.b16 %v1539, %v1538
        %v1585 = vpack.c.b16 %v1541, %v1540
        %v1586 = vpack.c.b16 %v1543, %v1542
        %v1587 = vpack.c.b16 %v1545, %v1544
        %v1588 = vpack.c.b16 %v1547, %v1546
        %v1589 = vpack.c.b16 %v1549, %v1548
        %v1590 = vpack.c.b16 %v1551, %v1550
        %v1591 = vpack.c.b16 %v1553, %v1552
        %v1592 = vpack.c.b16 %v1555, %v1554
        %v1593 = vpack.c.b16 %v1557, %v1556
        %v1594 = vpack.c.b16 %v1559, %v1558
        %v1595 = vpack.c.b16 %v1561, %v1560
        %v1596 = vpack.c.b16 %v1563, %v1562
        %v1597 = vpack.c.b16 %v1565, %v1564
        %v1598 = vpack.c.b16 %v1567, %v1566
        %v1599 = vpack.c.b16 %v1569, %v1568
        %v1600 = vpack.c.b16 %v1571, %v1570
        %v1601 = vpack.c.b16 %v1573, %v1572
        %v1602 = vpack.c.b16 %v1575, %v1574
        %v1603 = vpack.c.b16 %v1577, %v1576
        %v1604 = vpack.c.b16 %v1579, %v1578
        %v1605 = vpack.c.b16 %v1581, %v1580
        %1630 = vmatpush.bf16.msra.mxu0 %v1589
        %1631 = vmatpush.bf16.msra.mxu0 %v1588
        %1632 = vmatpush.bf16.msra.mxu0 %v1587
        %1633 = vmatpush.bf16.msra.mxu0 %v1586
        %1634 = vmatpush.bf16.msra.mxu0 %v1585
        %1635 = vmatpush.bf16.msra.mxu0 %v1584
        %1636 = vmatpush.bf16.msra.mxu0 %v1583
        %1637 = vmatpush.bf16.msra.mxu0 %v1582
        %1638 = vmatmul.bf16.gmra.mxu0 %v1408
        %v1639 = vpop.f32.mrf.mxu0
        %v1640 = vadd.f32 %v1485, %v1639
        %v1641 = vpop.f32.mrf.mxu0
        %v1642 = vadd.f32 %v1485, %v1641
        %1643 = vmatmul.bf16.gmra.mxu0 %v1409
        %v1644 = vpop.f32.mrf.mxu0
        %v1645 = vadd.f32 %v1485, %v1644
        %v1646 = vpop.f32.mrf.mxu0
        %v1647 = vadd.f32 %v1485, %v1646
        %1648 = vdwg.mxu0
        %1649 = vmatpush.bf16.msra.mxu0 %v1597
        %1650 = vmatpush.bf16.msra.mxu0 %v1596
        %1651 = vmatpush.bf16.msra.mxu0 %v1595
        %1652 = vmatpush.bf16.msra.mxu0 %v1594
        %1653 = vmatpush.bf16.msra.mxu0 %v1593
        %1654 = vmatpush.bf16.msra.mxu0 %v1592
        %1655 = vmatpush.bf16.msra.mxu0 %v1591
        %1656 = vmatpush.bf16.msra.mxu0 %v1590
        %1657 = vmatmul.bf16.gmra.mxu0 %v1420
        %v1658 = vpop.f32.mrf.mxu0
        %v1659 = vadd.f32 %v1640, %v1658
        %v1660 = vpop.f32.mrf.mxu0
        %v1661 = vadd.f32 %v1642, %v1660
        %1662 = vmatmul.bf16.gmra.mxu0 %v1421
        %v1663 = vpop.f32.mrf.mxu0
        %v1664 = vadd.f32 %v1645, %v1663
        %v1665 = vpop.f32.mrf.mxu0
        %v1666 = vadd.f32 %v1647, %v1665
        %1667 = vdwg.mxu0
        %1668 = vmatpush.bf16.msra.mxu0 %v1605
        %1669 = vmatpush.bf16.msra.mxu0 %v1604
        %1670 = vmatpush.bf16.msra.mxu0 %v1603
        %1671 = vmatpush.bf16.msra.mxu0 %v1602
        %1672 = vmatpush.bf16.msra.mxu0 %v1601
        %1673 = vmatpush.bf16.msra.mxu0 %v1600
        %1674 = vmatpush.bf16.msra.mxu0 %v1599
        %1675 = vmatpush.bf16.msra.mxu0 %v1598
        %1676 = vmatmul.bf16.gmra.mxu0 %v1432
        %v1677 = vpop.f32.mrf.mxu0
        %v1678 = vadd.f32 %v1659, %v1677
        %v1679 = vpop.f32.mrf.mxu0
        %v1680 = vadd.f32 %v1661, %v1679
        %1681 = vmatmul.bf16.gmra.mxu0 %v1433
        %v1682 = vpop.f32.mrf.mxu0
        %v1683 = vadd.f32 %v1664, %v1682
        %v1684 = vpop.f32.mrf.mxu0
        %v1685 = vadd.f32 %v1666, %v1684
        %1686 = vdwg.mxu0
        %v1687 = vmax.f32 %v1678, 0.0
        %v1688 = vmax.f32 %v1680, 0.0
        %v1689 = vmax.f32 %v1683, 0.0
        %v1690 = vmax.f32 %v1685, 0.0
        %v1691 = vsel %vm718, %v1687, 0.0
        %v1692 = vsel %vm719, %v1688, 0.0
        %v1693 = vsel %vm720, %v1689, 0.0
        %v1694 = vsel %vm721, %v1690, 0.0
        %v1695 = vrot.slane %v1691, 7
        %v1696 = vrot.slane %v1692, 7
        %v1697 = vrot.slane %v1693, 7
        %v1698 = vrot.slane %v1694, 7
        %v1699 = vsel %vm402, %v1697, %v1698
        %v1700 = vsel %vm402, %v1696, %v1697
        %v1701 = vsel %vm402, %v1695, %v1696
        %v1702 = vsel %vm402, %v1698, %v1695
        %v1703 = vpack.c.bf16 %v1702, %v1702
        %v1704 = vpack.c.bf16 %v1701, %v1701
        %v1705 = vpack.c.bf16 %v1700, %v1700
        %v1706 = vpack.c.bf16 %v1699, %v1699
        %v1707 = vpack.c.bf16 %v1691, %v1691
        %v1708 = vpack.c.bf16 %v1692, %v1692
        %v1709 = vpack.c.bf16 %v1693, %v1693
        %v1710 = vpack.c.bf16 %v1694, %v1694
        %v1711 = vrot.slane %v1691, 1
        %v1712 = vrot.slane %v1692, 1
        %v1713 = vrot.slane %v1693, 1
        %v1714 = vrot.slane %v1694, 1
        %v1715 = vsel %vm415, %v1713, %v1714
        %v1716 = vsel %vm415, %v1712, %v1713
        %v1717 = vsel %vm415, %v1711, %v1712
        %v1718 = vsel %vm415, %v1714, %v1711
        %v1719 = vpack.c.bf16 %v1717, %v1717
        %v1720 = vpack.c.bf16 %v1716, %v1716
        %v1721 = vpack.c.bf16 %v1715, %v1715
        %v1722 = vpack.c.bf16 %v1718, %v1718
        %v1727 = vunpack.c.l.b16 %v1703
        %v1728 = vunpack.c.l.b16 %v1704
        %v1729 = vunpack.c.l.b16 %v1705
        %v1730 = vunpack.c.l.b16 %v1706
        %v1731 = vpack.c.b16 %v1728, %v1727
        %v1732 = vpack.c.b16 %v1730, %v1729
        %v1739 = vunpack.c.l.b16 %v1707
        %v1740 = vunpack.c.l.b16 %v1708
        %v1741 = vunpack.c.l.b16 %v1709
        %v1742 = vunpack.c.l.b16 %v1710
        %v1743 = vpack.c.b16 %v1740, %v1739
        %v1744 = vpack.c.b16 %v1742, %v1741
        %v1751 = vunpack.c.l.b16 %v1719
        %v1752 = vunpack.c.l.b16 %v1720
        %v1753 = vunpack.c.l.b16 %v1721
        %v1754 = vunpack.c.l.b16 %v1722
        %v1755 = vpack.c.b16 %v1752, %v1751
        %v1756 = vpack.c.b16 %v1754, %v1753
        %s1759 = scalar_lea.vmem [#allocation5], 768
        %v1760 = vld [vmem:[%s1759] sm:$0xf]
        %v1761 = vld [vmem:[%s1759 + $0x4] sm:$0xf]
        %v1762 = vld [vmem:[%s1759 + $0x8] sm:$0xf]
        %v1763 = vld [vmem:[%s1759 + $0xc] sm:$0xf]
        %v1764 = vld [vmem:[%s1759 + $0x10] sm:$0xf]
        %v1765 = vld [vmem:[%s1759 + $0x14] sm:$0xf]
        %v1766 = vld [vmem:[%s1759 + $0x18] sm:$0xf]
        %v1767 = vld [vmem:[%s1759 + $0x1c] sm:$0xf]
        %v1768 = vld [vmem:[%s1759 + $0x20] sm:$0xf]
        %v1769 = vld [vmem:[%s1759 + $0x24] sm:$0xf]
        %v1770 = vld [vmem:[%s1759 + $0x28] sm:$0xf]
        %v1771 = vld [vmem:[%s1759 + $0x2c] sm:$0xf]
        %v1772 = vld [vmem:[%s1759 + $0x30] sm:$0xf]
        %v1773 = vld [vmem:[%s1759 + $0x34] sm:$0xf]
        %v1774 = vld [vmem:[%s1759 + $0x38] sm:$0xf]
        %v1775 = vld [vmem:[%s1759 + $0x3c] sm:$0xf]
        %v1776 = vld [vmem:[%s1759 + $0x40] sm:$0xf]
        %v1777 = vld [vmem:[%s1759 + $0x44] sm:$0xf]
        %v1778 = vld [vmem:[%s1759 + $0x48] sm:$0xf]
        %v1779 = vld [vmem:[%s1759 + $0x4c] sm:$0xf]
        %v1780 = vld [vmem:[%s1759 + $0x50] sm:$0xf]
        %v1781 = vld [vmem:[%s1759 + $0x54] sm:$0xf]
        %v1782 = vld [vmem:[%s1759 + $0x58] sm:$0xf]
        %v1783 = vld [vmem:[%s1759 + $0x5c] sm:$0xf]
        %v1784 = vld [vmem:[%s1759 + $0x60] sm:$0xf]
        %v1785 = vld [vmem:[%s1759 + $0x64] sm:$0xf]
        %v1786 = vld [vmem:[%s1759 + $0x68] sm:$0xf]
        %v1787 = vld [vmem:[%s1759 + $0x6c] sm:$0xf]
        %v1788 = vld [vmem:[%s1759 + $0x70] sm:$0xf]
        %v1789 = vld [vmem:[%s1759 + $0x74] sm:$0xf]
        %v1790 = vld [vmem:[%s1759 + $0x78] sm:$0xf]
        %v1791 = vld [vmem:[%s1759 + $0x7c] sm:$0xf]
        %v1792 = vld [vmem:[%s1759 + $0x80] sm:$0xf]
        %v1793 = vld [vmem:[%s1759 + $0x84] sm:$0xf]
        %v1794 = vld [vmem:[%s1759 + $0x88] sm:$0xf]
        %v1795 = vld [vmem:[%s1759 + $0x8c] sm:$0xf]
        %v1796 = vld [vmem:[%s1759 + $0x90] sm:$0xf]
        %v1797 = vld [vmem:[%s1759 + $0x94] sm:$0xf]
        %v1798 = vld [vmem:[%s1759 + $0x98] sm:$0xf]
        %v1799 = vld [vmem:[%s1759 + $0x9c] sm:$0xf]
        %v1800 = vld [vmem:[%s1759 + $0xa0] sm:$0xf]
        %v1801 = vld [vmem:[%s1759 + $0xa4] sm:$0xf]
        %v1802 = vld [vmem:[%s1759 + $0xa8] sm:$0xf]
        %v1803 = vld [vmem:[%s1759 + $0xac] sm:$0xf]
        %v1804 = vld [vmem:[%s1759 + $0xb0] sm:$0xf]
        %v1805 = vld [vmem:[%s1759 + $0xb4] sm:$0xf]
        %v1806 = vld [vmem:[%s1759 + $0xb8] sm:$0xf]
        %v1807 = vld [vmem:[%s1759 + $0xbc] sm:$0xf]
        %v1808 = vperm.slane %v285, 4
        %v1857 = vunpack.c.l.b16 %v1760
        %v1858 = vunpack.c.l.b16 %v1761
        %v1859 = vunpack.c.l.b16 %v1762
        %v1860 = vunpack.c.l.b16 %v1763
        %v1861 = vunpack.c.l.b16 %v1764
        %v1862 = vunpack.c.l.b16 %v1765
        %v1863 = vunpack.c.l.b16 %v1766
        %v1864 = vunpack.c.l.b16 %v1767
        %v1865 = vunpack.c.l.b16 %v1768
        %v1866 = vunpack.c.l.b16 %v1769
        %v1867 = vunpack.c.l.b16 %v1770
        %v1868 = vunpack.c.l.b16 %v1771
        %v1869 = vunpack.c.l.b16 %v1772
        %v1870 = vunpack.c.l.b16 %v1773
        %v1871 = vunpack.c.l.b16 %v1774
        %v1872 = vunpack.c.l.b16 %v1775
        %v1873 = vunpack.c.l.b16 %v1776
        %v1874 = vunpack.c.l.b16 %v1777
        %v1875 = vunpack.c.l.b16 %v1778
        %v1876 = vunpack.c.l.b16 %v1779
        %v1877 = vunpack.c.l.b16 %v1780
        %v1878 = vunpack.c.l.b16 %v1781
        %v1879 = vunpack.c.l.b16 %v1782
        %v1880 = vunpack.c.l.b16 %v1783
        %v1881 = vunpack.c.l.b16 %v1784
        %v1882 = vunpack.c.l.b16 %v1785
        %v1883 = vunpack.c.l.b16 %v1786
        %v1884 = vunpack.c.l.b16 %v1787
        %v1885 = vunpack.c.l.b16 %v1788
        %v1886 = vunpack.c.l.b16 %v1789
        %v1887 = vunpack.c.l.b16 %v1790
        %v1888 = vunpack.c.l.b16 %v1791
        %v1889 = vunpack.c.l.b16 %v1792
        %v1890 = vunpack.c.l.b16 %v1793
        %v1891 = vunpack.c.l.b16 %v1794
        %v1892 = vunpack.c.l.b16 %v1795
        %v1893 = vunpack.c.l.b16 %v1796
        %v1894 = vunpack.c.l.b16 %v1797
        %v1895 = vunpack.c.l.b16 %v1798
        %v1896 = vunpack.c.l.b16 %v1799
        %v1897 = vunpack.c.l.b16 %v1800
        %v1898 = vunpack.c.l.b16 %v1801
        %v1899 = vunpack.c.l.b16 %v1802
        %v1900 = vunpack.c.l.b16 %v1803
        %v1901 = vunpack.c.l.b16 %v1804
        %v1902 = vunpack.c.l.b16 %v1805
        %v1903 = vunpack.c.l.b16 %v1806
        %v1904 = vunpack.c.l.b16 %v1807
        %v1905 = vpack.c.b16 %v1858, %v1857
        %v1906 = vpack.c.b16 %v1860, %v1859
        %v1907 = vpack.c.b16 %v1862, %v1861
        %v1908 = vpack.c.b16 %v1864, %v1863
        %v1909 = vpack.c.b16 %v1866, %v1865
        %v1910 = vpack.c.b16 %v1868, %v1867
        %v1911 = vpack.c.b16 %v1870, %v1869
        %v1912 = vpack.c.b16 %v1872, %v1871
        %v1913 = vpack.c.b16 %v1874, %v1873
        %v1914 = vpack.c.b16 %v1876, %v1875
        %v1915 = vpack.c.b16 %v1878, %v1877
        %v1916 = vpack.c.b16 %v1880, %v1879
        %v1917 = vpack.c.b16 %v1882, %v1881
        %v1918 = vpack.c.b16 %v1884, %v1883
        %v1919 = vpack.c.b16 %v1886, %v1885
        %v1920 = vpack.c.b16 %v1888, %v1887
        %v1921 = vpack.c.b16 %v1890, %v1889
        %v1922 = vpack.c.b16 %v1892, %v1891
        %v1923 = vpack.c.b16 %v1894, %v1893
        %v1924 = vpack.c.b16 %v1896, %v1895
        %v1925 = vpack.c.b16 %v1898, %v1897
        %v1926 = vpack.c.b16 %v1900, %v1899
        %v1927 = vpack.c.b16 %v1902, %v1901
        %v1928 = vpack.c.b16 %v1904, %v1903
        %1953 = vmatpush.bf16.msra.mxu0 %v1912
        %1954 = vmatpush.bf16.msra.mxu0 %v1911
        %1955 = vmatpush.bf16.msra.mxu0 %v1910
        %1956 = vmatpush.bf16.msra.mxu0 %v1909
        %1957 = vmatpush.bf16.msra.mxu0 %v1908
        %1958 = vmatpush.bf16.msra.mxu0 %v1907
        %1959 = vmatpush.bf16.msra.mxu0 %v1906
        %1960 = vmatpush.bf16.msra.mxu0 %v1905
        %1961 = vmatmul.bf16.gmra.mxu0 %v1731
        %v1962 = vpop.f32.mrf.mxu0
        %v1963 = vpop.f32.mrf.mxu0
        %v1964 = vadd.f32 %v1808, %v1963
        %1965 = vmatmul.bf16.gmra.mxu0 %v1732
        %v1966 = vpop.f32.mrf.mxu0
        %v1967 = vadd.f32 %v1808, %v1966
        %v1968 = vpop.f32.mrf.mxu0
        %1969 = vdwg.mxu0
        %1970 = vmatpush.bf16.msra.mxu0 %v1920
        %1971 = vmatpush.bf16.msra.mxu0 %v1919
        %1972 = vmatpush.bf16.msra.mxu0 %v1918
        %1973 = vmatpush.bf16.msra.mxu0 %v1917
        %1974 = vmatpush.bf16.msra.mxu0 %v1916
        %1975 = vmatpush.bf16.msra.mxu0 %v1915
        %1976 = vmatpush.bf16.msra.mxu0 %v1914
        %1977 = vmatpush.bf16.msra.mxu0 %v1913
        %1978 = vmatmul.bf16.gmra.mxu0 %v1743
        %v1979 = vpop.f32.mrf.mxu0
        %v1980 = vpop.f32.mrf.mxu0
        %v1981 = vadd.f32 %v1964, %v1980
        %1982 = vmatmul.bf16.gmra.mxu0 %v1744
        %v1983 = vpop.f32.mrf.mxu0
        %v1984 = vadd.f32 %v1967, %v1983
        %v1985 = vpop.f32.mrf.mxu0
        %1986 = vdwg.mxu0
        %1987 = vmatpush.bf16.msra.mxu0 %v1928
        %1988 = vmatpush.bf16.msra.mxu0 %v1927
        %1989 = vmatpush.bf16.msra.mxu0 %v1926
        %1990 = vmatpush.bf16.msra.mxu0 %v1925
        %1991 = vmatpush.bf16.msra.mxu0 %v1924
        %1992 = vmatpush.bf16.msra.mxu0 %v1923
        %1993 = vmatpush.bf16.msra.mxu0 %v1922
        %1994 = vmatpush.bf16.msra.mxu0 %v1921
        %1995 = vmatmul.bf16.gmra.mxu0 %v1755
        %v1996 = vpop.f32.mrf.mxu0
        %v1997 = vpop.f32.mrf.mxu0
        %v1998 = vadd.f32 %v1981, %v1997
        %1999 = vmatmul.bf16.gmra.mxu0 %v1756
        %v2000 = vpop.f32.mrf.mxu0
        %v2001 = vadd.f32 %v1984, %v2000
        %v2002 = vpop.f32.mrf.mxu0
        %2003 = vdwg.mxu0
        %v2004 = vadd.f32 %v1998, %v370
        %v2005 = vadd.f32 %v2001, %v372
        %v2006 = vmax.f32 %v2004, 0.0
        %v2007 = vmax.f32 %v2005, 0.0
        %2008 = vst [vmem:[%s283] sm:$0xff] %v2006
        %2009 = vst [vmem:[%s283 + $0x8] sm:$0xff] %v2007
        %s2010 = sand.u32 %s136, 1
        %s2011 = scalar_lea.sflag [#allocation4], %s2010
        %s2012 = sand.u32 %s136, 1
        %s2013 = smul.addr %s2012, 16
        %s2014 = scalar_lea.vmem [#allocation10], %s2013
        // Predicated region
        $region53: #{tpu_custom_call.1} parent=35 // pred_check
          %p2015 = pneg %p146
        $region54: #{tpu_custom_call.1} parent=35 // pred_check_branch
          %2017 = sbr.rel (%p2015) target = $region56
        $region55: #{tpu_custom_call.1} parent=35 // pred_region
          %s2018 = smul.u32 2, %s28
          %2020 = vsyncadd %s2011, 0
          %s2021 = smul.addr %s27, 2
          %s2022 = sadd.s32 %s2018, %s2021
          %s2023 = smul.addr %s2022, 8
          %s2024 = scalar_lea.hbm %s4, %s2023
          %s2025 = sshll.u32 %s2014, 4
          %s2026 = int_to_ptr.vmem [resolvable:$true] %s2025
          %s2027 = sshll.u32 %s2024, 4
          %s2028 = int_to_ptr.hbm [resolvable:$true] %s2027
          %2033 = dma.vmem_to_hbm [thread:$0]  %s2026, 256, %s2028, %s2011, 128, 128, 8
        $region56: #{tpu_custom_call.1} parent=35 // pred_fallthru
          _
      $region36: #{tpu_custom_call.1} parent=5 // pred_fallthru
        _
      %p2034 = scmp.le.s32.totalorder 2, %s18
      // Predicated region
      $region57: #{tpu_custom_call.1} parent=5 // pred_check
        %p2035 = pneg %p2034
      $region58: #{tpu_custom_call.1} parent=5 // pred_check_branch
        %2037 = sbr.rel (%p2035) target = $region60
      $region59: #{tpu_custom_call.1} parent=5 // pred_region
        %s2038 = ssub.s32 %s18, 2
        // Predicated region
        $region61: #{tpu_custom_call.1} parent=59 // pred_check
          %p2039 = pneg %p152
        $region62: #{tpu_custom_call.1} parent=59 // pred_check_branch
          %2041 = sbr.rel (%p2039) target = $region64
        $region63: #{tpu_custom_call.1} parent=59 // pred_region
          %s2042 = sand.u32 %s137, 1
          %s2043 = scalar_lea.sflag [#allocation4], %s2042
          %s2044 = sand.u32 %s137, 1
          %s2045 = smul.addr %s2044, 16
          %s2046 = scalar_lea.vmem [#allocation10], %s2045
          %2048 = dma.done %s2043, 256
        $region64: #{tpu_custom_call.1} parent=59 // pred_fallthru
          _
      $region60: #{tpu_custom_call.1} parent=5 // pred_fallthru
        _
    $region6: #{tpu_custom_call.1} parent=1 // loop_footer
      %s22 = sadd.s32 1, %s18
    $region7: #{tpu_custom_call.1} parent=1 // loop_footer_branch
      %17 = sbr.rel target = $region3
    $region8: #{tpu_custom_call.1} parent=1 // loop_exit
      _
    %2049 = vsyncpa [#allocation3], 1
    %s2050 = scalar_lea.sflag [#allocation3], 1
    %2051 = vsyncpa %s2050, 1
    %2052 = vsyncpa [#allocation6], 1
    %2053 = vsyncpa [#allocation9], 1
    %2054 = vsyncpa [#allocation4], 1
    %s2055 = scalar_lea.sflag [#allocation4], 1
    %2056 = vsyncpa %s2055, 1

</llo_original>
